<compile_context>
chip_gen: v6e
topology: v6e:2x2x1
jax: 0.10.0
libtpu: 0.0.40
codegen_flags: <defaults>
</compile_context>

<pallas_src>
import random

import jax
import jax.numpy as jnp
from jax.experimental import pallas as pl
from jax.experimental.pallas import tpu as pltpu

LANE = 128


def _round_up(x, m):
    return (x + m - 1) // m * m


# ---------------------------------------------------------------------------
# Shared LSTM recurrence step.  x_gates = x @ W_ih + (b_ih + b_hh) is
# precomputed (hoisted); only h @ W_hh runs on the serial chain.
# PyTorch gate order i, f, g, o.
# ---------------------------------------------------------------------------
def _lstm_step(x_gates, h, c, wh_ref, H):
    gates = x_gates + jnp.dot(h.astype(jnp.bfloat16), wh_ref[...],
                              preferred_element_type=jnp.float32)
    i_g = jax.nn.sigmoid(gates[:, 0 * H:1 * H])
    f_g = jax.nn.sigmoid(gates[:, 1 * H:2 * H])
    g_g = jnp.tanh(gates[:, 2 * H:3 * H])
    o_g = jax.nn.sigmoid(gates[:, 3 * H:4 * H])
    c_new = f_g * c + i_g * g_g
    h_new = o_g * jnp.tanh(c_new)
    return h_new, c_new


# ---------------------------------------------------------------------------
# Encoder: whole source-embedding slab resident in VMEM; input projection
# hoisted into one big matmul; recurrence in an in-kernel fori_loop.
# ---------------------------------------------------------------------------
def encoder_kernel(src_ref, wx_ref, wh_ref, b_ref, h_out_ref, c_out_ref, xg_sc):
    T, B, E = src_ref.shape
    H = h_out_ref.shape[1]

    # Hoisted input projection for all T steps (bias folded in once).
    x_all = src_ref[...].reshape(T * B, E)
    xg = jnp.dot(x_all, wx_ref[...], preferred_element_type=jnp.float32) + b_ref[...]
    xg_sc[...] = xg.reshape(T, B, 4 * H)

    def step(t, carry):
        h, c = carry
        return _lstm_step(xg_sc[t], h, c, wh_ref, H)

    h0 = jnp.zeros((B, H), jnp.float32)
    c0 = jnp.zeros((B, H), jnp.float32)
    h, c = jax.lax.fori_loop(0, T, step, (h0, c0), unroll=True)
    h_out_ref[...] = h
    c_out_ref[...] = c


def run_encoder(src_emb, wx, wh, b):
    T, B, E = src_emb.shape
    H = wh.shape[0]
    vmem = pl.BlockSpec(memory_space=pltpu.MemorySpace.VMEM)
    return pl.pallas_call(
        encoder_kernel,
        out_shape=(jax.ShapeDtypeStruct((B, H), jnp.float32),
                   jax.ShapeDtypeStruct((B, H), jnp.float32)),
        in_specs=[vmem, vmem, vmem, vmem],
        out_specs=(vmem, vmem),
        scratch_shapes=[pltpu.VMEM((T, B, 4 * H), jnp.float32)],
        compiler_params=pltpu.CompilerParams(
            vmem_limit_bytes=48 * 1024 * 1024),
    )(src_emb, wx, wh, b)


# ---------------------------------------------------------------------------
# Decoder: ONE kernel invocation; in-kernel pl.loop over steps.  Teacher-token
# input projections precomputed in one matmul; h/c and the greedy-token gate
# projection persist in VMEM scratch; all weights resident.
# ---------------------------------------------------------------------------
def decoder_kernel(tf_ref, tgt_emb_ref, h0_ref, c0_ref, wx_ref, wh_ref, b_ref,
                   emb_ref, fcw_ref, fcb_ref, out_ref,
                   xg_sc, xpg_sc, h_sc, c_sc):
    S, B, E = tgt_emb_ref.shape
    H = h0_ref.shape[1]
    V = fcw_ref.shape[1]

    # Hoisted teacher-token input projections for all S steps (bias folded in).
    x_all = tgt_emb_ref[...].reshape(S * B, E)
    xg = jnp.dot(x_all, wx_ref[...], preferred_element_type=jnp.float32) + b_ref[...]
    xg_sc[...] = xg.reshape(S, B, 4 * H)

    h_sc[...] = h0_ref[...]
    c_sc[...] = c0_ref[...]
    xpg_sc[...] = jnp.zeros_like(xpg_sc)   # never read before written (tf[0]=1)

    @pl.loop(0, S)
    def _(s):
        use_teacher = tf_ref[s] != 0
        gates_x = jnp.where(use_teacher, xg_sc[s], xpg_sc[...])

        h_new, c_new = _lstm_step(gates_x, h_sc[...], c_sc[...], wh_ref, H)
        h_sc[...] = h_new
        c_sc[...] = c_new

        logits = (jnp.dot(h_new.astype(jnp.bfloat16), fcw_ref[...],
                          preferred_element_type=jnp.float32) + fcb_ref[...])
        out_ref[s] = logits                      # lane-dense (B, V_pad) store

        # Greedy argmax + embedding gather + its W_x projection: only needed
        # when the NEXT step is not teacher-forced (and a next step exists).
        need_greedy = jnp.logical_and(
            s + 1 < S, tf_ref[jnp.minimum(s + 1, S - 1)] == 0)

        @pl.when(need_greedy)
        def _():
            # First-occurrence argmax; padded vocab columns carry a -1e9 bias
            # so they are never selected.  Greedy-token embedding gathered via
            # a one-hot matmul against the resident table.
            col = jax.lax.broadcasted_iota(jnp.int32, (B, V), 1).astype(jnp.float32)
            maxv = jnp.max(logits, axis=1, keepdims=True)
            best = jnp.min(jnp.where(logits == maxv, col, float(V)),
                           axis=1, keepdims=True)
            one_hot = (col == best).astype(jnp.bfloat16)
            x_greedy = jnp.dot(one_hot, emb_ref[...],
                               preferred_element_type=jnp.float32
                               ).astype(jnp.bfloat16)
            xpg_sc[...] = (jnp.dot(x_greedy, wx_ref[...],
                                   preferred_element_type=jnp.float32)
                           + b_ref[...])


def run_decoder(tf_mask, tgt_emb, h0, c0, wx, wh, b, emb, fc_w, fc_b):
    S, B, E = tgt_emb.shape            # S = tgt_len - 1
    H = h0.shape[1]
    V = fc_w.shape[1]
    vmem = pl.BlockSpec(memory_space=pltpu.MemorySpace.VMEM)
    smem = pl.BlockSpec(memory_space=pltpu.MemorySpace.SMEM)
    return pl.pallas_call(
        decoder_kernel,
        out_shape=jax.ShapeDtypeStruct((S, B, V), jnp.float32),
        in_specs=[smem] + [vmem] * 9,
        out_specs=vmem,
        scratch_shapes=[pltpu.VMEM((S, B, 4 * H), jnp.float32),   # teacher x-gates
                        pltpu.VMEM((B, 4 * H), jnp.float32),      # greedy x-gates
                        pltpu.VMEM((B, H), jnp.float32),          # h
                        pltpu.VMEM((B, H), jnp.float32)],         # c
        compiler_params=pltpu.CompilerParams(
            vmem_limit_bytes=48 * 1024 * 1024),
    )(tf_mask, tgt_emb, h0, c0, wx, wh, b, emb, fc_w, fc_b)


# ---------------------------------------------------------------------------
# Parameter packing: pad to lane-aligned shapes (E, H-per-gate, V -> 128),
# keep input / recurrent weights separate (split dots), bf16 MXU operands.
# Gate blocks stay separable ([i|f|g|o], each H_pad wide) so zero-padded hidden
# columns stay exactly zero through the recurrence.
# ---------------------------------------------------------------------------
def _pad_gate_w(w, in_dim, H, in_pad, H_pad):
    w = w.reshape(in_dim, 4, H)
    w = jnp.pad(w, ((0, in_pad - in_dim), (0, 0), (0, H_pad - H)))
    return w.reshape(in_pad, 4 * H_pad)


def _pad_gate_b(b, H, H_pad):
    b = b.reshape(1, 4, H)
    b = jnp.pad(b, ((0, 0), (0, 0), (0, H_pad - H)))
    return b.reshape(1, 4 * H_pad)


def pack_params(p, emb, hidden, tgt_vocab):
    E, H, V = emb, hidden, tgt_vocab
    Ep, Hp, Vp = _round_up(E, LANE), _round_up(H, LANE), _round_up(V, LANE)
    # padded vocab columns get a huge negative bias so argmax never picks them
    fc_b = jnp.pad(p["dec_fc_b"], ((0, 0), (0, Vp - V)), constant_values=-1e9)
    return {
        "enc_emb": jnp.pad(p["enc_emb"], ((0, 0), (0, Ep - E))).astype(jnp.bfloat16),
        "enc_wx": _pad_gate_w(p["enc_w_ih"], E, H, Ep, Hp).astype(jnp.bfloat16),
        "enc_wh": _pad_gate_w(p["enc_w_hh"], H, H, Hp, Hp).astype(jnp.bfloat16),
        "enc_b": _pad_gate_b(p["enc_b"], H, Hp),
        "dec_emb": jnp.pad(p["dec_emb"], ((0, Vp - V), (0, Ep - E))).astype(jnp.bfloat16),
        "dec_wx": _pad_gate_w(p["dec_w_ih"], E, H, Ep, Hp).astype(jnp.bfloat16),
        "dec_wh": _pad_gate_w(p["dec_w_hh"], H, H, Hp, Hp).astype(jnp.bfloat16),
        "dec_b": _pad_gate_b(p["dec_b"], H, Hp),
        "dec_fc_w": jnp.pad(p["dec_fc_w"], ((0, Hp - H), (0, Vp - V))).astype(jnp.bfloat16),
        "dec_fc_b": fc_b,
    }


# ---------------------------------------------------------------------------
# Seq2Seq forward (mirrors the PyTorch module's forward)
# ---------------------------------------------------------------------------
def seq2seq_forward(packed, source, target, tgt_vocab, teacher_force_ratio=0.5):
    tgt_len, batch = target.shape
    V = tgt_vocab
    Bp = _round_up(max(batch, 16), 16)      # bf16 sublane tile

    # ---- encoder ----------------------------------------------------------
    src_pad = jnp.pad(source, ((0, 0), (0, Bp - batch)))          # (T, Bp)
    src_emb = jnp.take(packed["enc_emb"], src_pad, axis=0)        # (T, Bp, Ep)
    hidden, cell = run_encoder(src_emb, packed["enc_wx"],
                               packed["enc_wh"], packed["enc_b"])

    # ---- decoder ----------------------------------------------------------
    # teacher-token embeddings are known ahead of time: decoder step s (which
    # produces outputs[s+1]) reads target[s] when teacher-forced.
    tgt_pad = jnp.pad(target, ((0, 0), (0, Bp - batch)))
    tgt_emb = jnp.take(packed["dec_emb"], tgt_pad[:-1], axis=0)   # (T-1, Bp, Ep)

    # per-forward Bernoulli draws (step 0 always uses target[0], as reference).
    tf_mask = [1] + [int(random.random() < teacher_force_ratio)
                     for _ in range(tgt_len - 2)]
    tf_mask = jnp.asarray(tf_mask, jnp.int32)

    logits = run_decoder(tf_mask, tgt_emb, hidden, cell,
                         packed["dec_wx"], packed["dec_wh"], packed["dec_b"],
                         packed["dec_emb"], packed["dec_fc_w"],
                         packed["dec_fc_b"])
    outputs = jnp.concatenate(
        [jnp.zeros((1, batch, V), jnp.float32), logits[:, :batch, :V]], axis=0)
    return outputs


# ---------------------------------------------------------------------------
# Deterministic parameter init (logical / PyTorch-like shapes) + example run
# ---------------------------------------------------------------------------
def init_params(key, src_vocab, tgt_vocab, emb, hidden):
    ks = jax.random.split(key, 10)
    s = 0.1
    # NOTE: LSTM biases are the pre-summed (b_ih + b_hh) of nn.LSTM; weights
    # are stored transposed (in_dim, 4H) for the x @ W layout, gate order ifgo.
    return {
        "enc_emb":  jax.random.normal(ks[0], (src_vocab, emb), jnp.float32) * s,
        "enc_w_ih": jax.random.normal(ks[1], (emb, 4 * hidden), jnp.float32) * s,
        "enc_w_hh": jax.random.normal(ks[2], (hidden, 4 * hidden), jnp.float32) * s,
        "enc_b":    jax.random.normal(ks[3], (1, 4 * hidden), jnp.float32) * s,
        "dec_emb":  jax.random.normal(ks[4], (tgt_vocab, emb), jnp.float32) * s,
        "dec_w_ih": jax.random.normal(ks[5], (emb, 4 * hidden), jnp.float32) * s,
        "dec_w_hh": jax.random.normal(ks[6], (hidden, 4 * hidden), jnp.float32) * s,
        "dec_b":    jax.random.normal(ks[7], (1, 4 * hidden), jnp.float32) * s,
        "dec_fc_w": jax.random.normal(ks[8], (hidden, tgt_vocab), jnp.float32) * s,
        "dec_fc_b": jax.random.normal(ks[9], (1, tgt_vocab), jnp.float32) * s,
    }


if __name__ == "__main__":
    random.seed(0)
    key = jax.random.PRNGKey(0)

    SRC_VOCAB, TGT_VOCAB = 48, 32
    EMB, HID = 16, 32
    SRC_LEN, TGT_LEN, BATCH = 8, 8, 4

    k_p, k_s, k_t = jax.random.split(key, 3)
    params = init_params(k_p, SRC_VOCAB, TGT_VOCAB, EMB, HID)
    packed = pack_params(params, EMB, HID, TGT_VOCAB)

    source = jax.random.randint(k_s, (SRC_LEN, BATCH), 0, SRC_VOCAB, jnp.int32)
    target = jax.random.randint(k_t, (TGT_LEN, BATCH), 0, TGT_VOCAB, jnp.int32)

    out = seq2seq_forward(packed, source, target, TGT_VOCAB,
                          teacher_force_ratio=0.5)
    out = jax.block_until_ready(out)
    assert out.shape == (TGT_LEN, BATCH, TGT_VOCAB)
    assert bool(jnp.all(jnp.isfinite(out)))
    print("KERNEL_OK")
</pallas_src>

<mosaic_0001>
module attributes {stable_mosaic.version = 11 : i64} {
  func.func @encoder_kernel(%arg0: memref<8x16x128xbf16, #tpu.memory_space<vmem>>, %arg1: memref<128x512xbf16, #tpu.memory_space<vmem>>, %arg2: memref<128x512xbf16, #tpu.memory_space<vmem>>, %arg3: memref<1x512xf32, #tpu.memory_space<vmem>>, %arg4: memref<16x128xf32, #tpu.memory_space<vmem>>, %arg5: memref<16x128xf32, #tpu.memory_space<vmem>>, %arg6: memref<8x16x512xf32, #tpu.memory_space<vmem>>) attributes {dimension_semantics = [], scalar_prefetch = 0 : i64, scratch_operands = 1 : i64, tpu.core_type = #tpu.core_type<tc>} {
    %c0 = arith.constant 0 : index
    %c0_0 = arith.constant 0 : index
    %c0_1 = arith.constant 0 : index
    %0 = vector.load %arg0[%c0, %c0_0, %c0_1] : memref<8x16x128xbf16, #tpu.memory_space<vmem>>, vector<8x16x128xbf16>
    %1 = vector.shape_cast %0 : vector<8x16x128xbf16> to vector<128x128xbf16>
    %c0_2 = arith.constant 0 : index
    %c0_3 = arith.constant 0 : index
    %2 = vector.load %arg1[%c0_2, %c0_3] : memref<128x512xbf16, #tpu.memory_space<vmem>>, vector<128x512xbf16>
    %cst = arith.constant dense<0.000000e+00> : vector<128x512xf32>
    %3 = tpu.matmul %1, %2, %cst {dimension_numbers = #tpu.dot_dimension_numbers<[1], [0], [0], [1], [0, 0, 1, 1], [], []>} : vector<128x128xbf16>, vector<128x512xbf16>, vector<128x512xf32> -> vector<128x512xf32>
    %c0_4 = arith.constant 0 : index
    %c0_5 = arith.constant 0 : index
    %4 = vector.load %arg3[%c0_4, %c0_5] : memref<1x512xf32, #tpu.memory_space<vmem>>, vector<1x512xf32>
    %5 = vector.broadcast %4 : vector<1x512xf32> to vector<128x512xf32>
    %6 = arith.addf %3, %5 : vector<128x512xf32>
    %7 = vector.shape_cast %6 : vector<128x512xf32> to vector<8x16x512xf32>
    %c0_6 = arith.constant 0 : index
    %c0_7 = arith.constant 0 : index
    %c0_8 = arith.constant 0 : index
    %8 = vector.load %arg6[%c0_6, %c0_7, %c0_8] : memref<8x16x512xf32, #tpu.memory_space<vmem>>, vector<8x16x512xf32>
    tpu.vector_store %arg6[%c0_6, %c0_7, %c0_8], %7 {strides = array<i32>} : memref<8x16x512xf32, #tpu.memory_space<vmem>>, vector<8x16x512xf32>,
    %cst_9 = arith.constant 0.000000e+00 : f32
    %9 = vector.broadcast %cst_9 : f32 to vector<16x128xf32>
    %cst_10 = arith.constant 0.000000e+00 : f32
    %10 = vector.broadcast %cst_10 : f32 to vector<16x128xf32>
    %c0_i32 = arith.constant 0 : i32
    %11 = arith.index_cast %c0_i32 : i32 to index
    %c0_11 = arith.constant 0 : index
    %c0_12 = arith.constant 0 : index
    %12 = vector.load %arg6[%11, %c0_11, %c0_12] : memref<8x16x512xf32, #tpu.memory_space<vmem>>, vector<1x16x512xf32>
    %13 = vector.shape_cast %12 : vector<1x16x512xf32> to vector<16x512xf32>
    %14 = arith.truncf %9 : vector<16x128xf32> to vector<16x128xbf16>
    %c0_13 = arith.constant 0 : index
    %c0_14 = arith.constant 0 : index
    %15 = vector.load %arg2[%c0_13, %c0_14] : memref<128x512xbf16, #tpu.memory_space<vmem>>, vector<128x512xbf16>
    %cst_15 = arith.constant dense<0.000000e+00> : vector<16x512xf32>
    %16 = tpu.matmul %14, %15, %cst_15 {dimension_numbers = #tpu.dot_dimension_numbers<[1], [0], [0], [1], [0, 0, 1, 1], [], []>} : vector<16x128xbf16>, vector<128x512xbf16>, vector<16x512xf32> -> vector<16x512xf32>
    %17 = arith.addf %13, %16 : vector<16x512xf32>
    %18 = vector.extract_strided_slice %17 {offsets = [0, 0], sizes = [16, 128], strides = [1, 1]} : vector<16x512xf32> to vector<16x128xf32>
    %19 = arith.negf %18 : vector<16x128xf32>
    %20 = math.exp %19 : vector<16x128xf32>
    %cst_16 = arith.constant 1.000000e+00 : f32
    %21 = vector.broadcast %cst_16 : f32 to vector<16x128xf32>
    %22 = arith.addf %21, %20 : vector<16x128xf32>
    %23 = arith.divf %21, %22 : vector<16x128xf32>
    %24 = vector.extract_strided_slice %17 {offsets = [0, 128], sizes = [16, 128], strides = [1, 1]} : vector<16x512xf32> to vector<16x128xf32>
    %25 = arith.negf %24 : vector<16x128xf32>
    %26 = math.exp %25 : vector<16x128xf32>
    %cst_17 = arith.constant 1.000000e+00 : f32
    %27 = vector.broadcast %cst_17 : f32 to vector<16x128xf32>
    %28 = arith.addf %27, %26 : vector<16x128xf32>
    %29 = arith.divf %27, %28 : vector<16x128xf32>
    %30 = vector.extract_strided_slice %17 {offsets = [0, 256], sizes = [16, 128], strides = [1, 1]} : vector<16x512xf32> to vector<16x128xf32>
    %31 = math.tanh %30 : vector<16x128xf32>
    %32 = vector.extract_strided_slice %17 {offsets = [0, 384], sizes = [16, 128], strides = [1, 1]} : vector<16x512xf32> to vector<16x128xf32>
    %33 = arith.negf %32 : vector<16x128xf32>
    %34 = math.exp %33 : vector<16x128xf32>
    %cst_18 = arith.constant 1.000000e+00 : f32
    %35 = vector.broadcast %cst_18 : f32 to vector<16x128xf32>
    %36 = arith.addf %35, %34 : vector<16x128xf32>
    %37 = arith.divf %35, %36 : vector<16x128xf32>
    %38 = arith.mulf %29, %10 : vector<16x128xf32>
    %39 = arith.mulf %23, %31 : vector<16x128xf32>
    %40 = arith.addf %38, %39 : vector<16x128xf32>
    %41 = math.tanh %40 : vector<16x128xf32>
    %42 = arith.mulf %37, %41 : vector<16x128xf32>
    %c1_i32 = arith.constant 1 : i32
    %43 = arith.index_cast %c1_i32 : i32 to index
    %c0_19 = arith.constant 0 : index
    %c0_20 = arith.constant 0 : index
    %44 = vector.load %arg6[%43, %c0_19, %c0_20] : memref<8x16x512xf32, #tpu.memory_space<vmem>>, vector<1x16x512xf32>
    %45 = vector.shape_cast %44 : vector<1x16x512xf32> to vector<16x512xf32>
    %46 = arith.truncf %42 : vector<16x128xf32> to vector<16x128xbf16>
    %c0_21 = arith.constant 0 : index
    %c0_22 = arith.constant 0 : index
    %47 = vector.load %arg2[%c0_21, %c0_22] : memref<128x512xbf16, #tpu.memory_space<vmem>>, vector<128x512xbf16>
    %cst_23 = arith.constant dense<0.000000e+00> : vector<16x512xf32>
    %48 = tpu.matmul %46, %47, %cst_23 {dimension_numbers = #tpu.dot_dimension_numbers<[1], [0], [0], [1], [0, 0, 1, 1], [], []>} : vector<16x128xbf16>, vector<128x512xbf16>, vector<16x512xf32> -> vector<16x512xf32>
    %49 = arith.addf %45, %48 : vector<16x512xf32>
    %50 = vector.extract_strided_slice %49 {offsets = [0, 0], sizes = [16, 128], strides = [1, 1]} : vector<16x512xf32> to vector<16x128xf32>
    %51 = arith.negf %50 : vector<16x128xf32>
    %52 = math.exp %51 : vector<16x128xf32>
    %cst_24 = arith.constant 1.000000e+00 : f32
    %53 = vector.broadcast %cst_24 : f32 to vector<16x128xf32>
    %54 = arith.addf %53, %52 : vector<16x128xf32>
    %55 = arith.divf %53, %54 : vector<16x128xf32>
    %56 = vector.extract_strided_slice %49 {offsets = [0, 128], sizes = [16, 128], strides = [1, 1]} : vector<16x512xf32> to vector<16x128xf32>
    %57 = arith.negf %56 : vector<16x128xf32>
    %58 = math.exp %57 : vector<16x128xf32>
    %cst_25 = arith.constant 1.000000e+00 : f32
    %59 = vector.broadcast %cst_25 : f32 to vector<16x128xf32>
    %60 = arith.addf %59, %58 : vector<16x128xf32>
    %61 = arith.divf %59, %60 : vector<16x128xf32>
    %62 = vector.extract_strided_slice %49 {offsets = [0, 256], sizes = [16, 128], strides = [1, 1]} : vector<16x512xf32> to vector<16x128xf32>
    %63 = math.tanh %62 : vector<16x128xf32>
    %64 = vector.extract_strided_slice %49 {offsets = [0, 384], sizes = [16, 128], strides = [1, 1]} : vector<16x512xf32> to vector<16x128xf32>
    %65 = arith.negf %64 : vector<16x128xf32>
    %66 = math.exp %65 : vector<16x128xf32>
    %cst_26 = arith.constant 1.000000e+00 : f32
    %67 = vector.broadcast %cst_26 : f32 to vector<16x128xf32>
    %68 = arith.addf %67, %66 : vector<16x128xf32>
    %69 = arith.divf %67, %68 : vector<16x128xf32>
    %70 = arith.mulf %61, %40 : vector<16x128xf32>
    %71 = arith.mulf %55, %63 : vector<16x128xf32>
    %72 = arith.addf %70, %71 : vector<16x128xf32>
    %73 = math.tanh %72 : vector<16x128xf32>
    %74 = arith.mulf %69, %73 : vector<16x128xf32>
    %c2_i32 = arith.constant 2 : i32
    %75 = arith.index_cast %c2_i32 : i32 to index
    %c0_27 = arith.constant 0 : index
    %c0_28 = arith.constant 0 : index
    %76 = vector.load %arg6[%75, %c0_27, %c0_28] : memref<8x16x512xf32, #tpu.memory_space<vmem>>, vector<1x16x512xf32>
    %77 = vector.shape_cast %76 : vector<1x16x512xf32> to vector<16x512xf32>
    %78 = arith.truncf %74 : vector<16x128xf32> to vector<16x128xbf16>
    %c0_29 = arith.constant 0 : index
    %c0_30 = arith.constant 0 : index
    %79 = vector.load %arg2[%c0_29, %c0_30] : memref<128x512xbf16, #tpu.memory_space<vmem>>, vector<128x512xbf16>
    %cst_31 = arith.constant dense<0.000000e+00> : vector<16x512xf32>
    %80 = tpu.matmul %78, %79, %cst_31 {dimension_numbers = #tpu.dot_dimension_numbers<[1], [0], [0], [1], [0, 0, 1, 1], [], []>} : vector<16x128xbf16>, vector<128x512xbf16>, vector<16x512xf32> -> vector<16x512xf32>
    %81 = arith.addf %77, %80 : vector<16x512xf32>
    %82 = vector.extract_strided_slice %81 {offsets = [0, 0], sizes = [16, 128], strides = [1, 1]} : vector<16x512xf32> to vector<16x128xf32>
    %83 = arith.negf %82 : vector<16x128xf32>
    %84 = math.exp %83 : vector<16x128xf32>
    %cst_32 = arith.constant 1.000000e+00 : f32
    %85 = vector.broadcast %cst_32 : f32 to vector<16x128xf32>
    %86 = arith.addf %85, %84 : vector<16x128xf32>
    %87 = arith.divf %85, %86 : vector<16x128xf32>
    %88 = vector.extract_strided_slice %81 {offsets = [0, 128], sizes = [16, 128], strides = [1, 1]} : vector<16x512xf32> to vector<16x128xf32>
    %89 = arith.negf %88 : vector<16x128xf32>
    %90 = math.exp %89 : vector<16x128xf32>
    %cst_33 = arith.constant 1.000000e+00 : f32
    %91 = vector.broadcast %cst_33 : f32 to vector<16x128xf32>
    %92 = arith.addf %91, %90 : vector<16x128xf32>
    %93 = arith.divf %91, %92 : vector<16x128xf32>
    %94 = vector.extract_strided_slice %81 {offsets = [0, 256], sizes = [16, 128], strides = [1, 1]} : vector<16x512xf32> to vector<16x128xf32>
    %95 = math.tanh %94 : vector<16x128xf32>
    %96 = vector.extract_strided_slice %81 {offsets = [0, 384], sizes = [16, 128], strides = [1, 1]} : vector<16x512xf32> to vector<16x128xf32>
    %97 = arith.negf %96 : vector<16x128xf32>
    %98 = math.exp %97 : vector<16x128xf32>
    %cst_34 = arith.constant 1.000000e+00 : f32
    %99 = vector.broadcast %cst_34 : f32 to vector<16x128xf32>
    %100 = arith.addf %99, %98 : vector<16x128xf32>
    %101 = arith.divf %99, %100 : vector<16x128xf32>
    %102 = arith.mulf %93, %72 : vector<16x128xf32>
    %103 = arith.mulf %87, %95 : vector<16x128xf32>
    %104 = arith.addf %102, %103 : vector<16x128xf32>
    %105 = math.tanh %104 : vector<16x128xf32>
    %106 = arith.mulf %101, %105 : vector<16x128xf32>
    %c3_i32 = arith.constant 3 : i32
    %107 = arith.index_cast %c3_i32 : i32 to index
    %c0_35 = arith.constant 0 : index
    %c0_36 = arith.constant 0 : index
    %108 = vector.load %arg6[%107, %c0_35, %c0_36] : memref<8x16x512xf32, #tpu.memory_space<vmem>>, vector<1x16x512xf32>
    %109 = vector.shape_cast %108 : vector<1x16x512xf32> to vector<16x512xf32>
    %110 = arith.truncf %106 : vector<16x128xf32> to vector<16x128xbf16>
    %c0_37 = arith.constant 0 : index
    %c0_38 = arith.constant 0 : index
    %111 = vector.load %arg2[%c0_37, %c0_38] : memref<128x512xbf16, #tpu.memory_space<vmem>>, vector<128x512xbf16>
    %cst_39 = arith.constant dense<0.000000e+00> : vector<16x512xf32>
    %112 = tpu.matmul %110, %111, %cst_39 {dimension_numbers = #tpu.dot_dimension_numbers<[1], [0], [0], [1], [0, 0, 1, 1], [], []>} : vector<16x128xbf16>, vector<128x512xbf16>, vector<16x512xf32> -> vector<16x512xf32>
    %113 = arith.addf %109, %112 : vector<16x512xf32>
    %114 = vector.extract_strided_slice %113 {offsets = [0, 0], sizes = [16, 128], strides = [1, 1]} : vector<16x512xf32> to vector<16x128xf32>
    %115 = arith.negf %114 : vector<16x128xf32>
    %116 = math.exp %115 : vector<16x128xf32>
    %cst_40 = arith.constant 1.000000e+00 : f32
    %117 = vector.broadcast %cst_40 : f32 to vector<16x128xf32>
    %118 = arith.addf %117, %116 : vector<16x128xf32>
    %119 = arith.divf %117, %118 : vector<16x128xf32>
    %120 = vector.extract_strided_slice %113 {offsets = [0, 128], sizes = [16, 128], strides = [1, 1]} : vector<16x512xf32> to vector<16x128xf32>
    %121 = arith.negf %120 : vector<16x128xf32>
    %122 = math.exp %121 : vector<16x128xf32>
    %cst_41 = arith.constant 1.000000e+00 : f32
    %123 = vector.broadcast %cst_41 : f32 to vector<16x128xf32>
    %124 = arith.addf %123, %122 : vector<16x128xf32>
    %125 = arith.divf %123, %124 : vector<16x128xf32>
    %126 = vector.extract_strided_slice %113 {offsets = [0, 256], sizes = [16, 128], strides = [1, 1]} : vector<16x512xf32> to vector<16x128xf32>
    %127 = math.tanh %126 : vector<16x128xf32>
    %128 = vector.extract_strided_slice %113 {offsets = [0, 384], sizes = [16, 128], strides = [1, 1]} : vector<16x512xf32> to vector<16x128xf32>
    %129 = arith.negf %128 : vector<16x128xf32>
    %130 = math.exp %129 : vector<16x128xf32>
    %cst_42 = arith.constant 1.000000e+00 : f32
    %131 = vector.broadcast %cst_42 : f32 to vector<16x128xf32>
    %132 = arith.addf %131, %130 : vector<16x128xf32>
    %133 = arith.divf %131, %132 : vector<16x128xf32>
    %134 = arith.mulf %125, %104 : vector<16x128xf32>
    %135 = arith.mulf %119, %127 : vector<16x128xf32>
    %136 = arith.addf %134, %135 : vector<16x128xf32>
    %137 = math.tanh %136 : vector<16x128xf32>
    %138 = arith.mulf %133, %137 : vector<16x128xf32>
    %c4_i32 = arith.constant 4 : i32
    %139 = arith.index_cast %c4_i32 : i32 to index
    %c0_43 = arith.constant 0 : index
    %c0_44 = arith.constant 0 : index
    %140 = vector.load %arg6[%139, %c0_43, %c0_44] : memref<8x16x512xf32, #tpu.memory_space<vmem>>, vector<1x16x512xf32>
    %141 = vector.shape_cast %140 : vector<1x16x512xf32> to vector<16x512xf32>
    %142 = arith.truncf %138 : vector<16x128xf32> to vector<16x128xbf16>
    %c0_45 = arith.constant 0 : index
    %c0_46 = arith.constant 0 : index
    %143 = vector.load %arg2[%c0_45, %c0_46] : memref<128x512xbf16, #tpu.memory_space<vmem>>, vector<128x512xbf16>
    %cst_47 = arith.constant dense<0.000000e+00> : vector<16x512xf32>
    %144 = tpu.matmul %142, %143, %cst_47 {dimension_numbers = #tpu.dot_dimension_numbers<[1], [0], [0], [1], [0, 0, 1, 1], [], []>} : vector<16x128xbf16>, vector<128x512xbf16>, vector<16x512xf32> -> vector<16x512xf32>
    %145 = arith.addf %141, %144 : vector<16x512xf32>
    %146 = vector.extract_strided_slice %145 {offsets = [0, 0], sizes = [16, 128], strides = [1, 1]} : vector<16x512xf32> to vector<16x128xf32>
    %147 = arith.negf %146 : vector<16x128xf32>
    %148 = math.exp %147 : vector<16x128xf32>
    %cst_48 = arith.constant 1.000000e+00 : f32
    %149 = vector.broadcast %cst_48 : f32 to vector<16x128xf32>
    %150 = arith.addf %149, %148 : vector<16x128xf32>
    %151 = arith.divf %149, %150 : vector<16x128xf32>
    %152 = vector.extract_strided_slice %145 {offsets = [0, 128], sizes = [16, 128], strides = [1, 1]} : vector<16x512xf32> to vector<16x128xf32>
    %153 = arith.negf %152 : vector<16x128xf32>
    %154 = math.exp %153 : vector<16x128xf32>
    %cst_49 = arith.constant 1.000000e+00 : f32
    %155 = vector.broadcast %cst_49 : f32 to vector<16x128xf32>
    %156 = arith.addf %155, %154 : vector<16x128xf32>
    %157 = arith.divf %155, %156 : vector<16x128xf32>
    %158 = vector.extract_strided_slice %145 {offsets = [0, 256], sizes = [16, 128], strides = [1, 1]} : vector<16x512xf32> to vector<16x128xf32>
    %159 = math.tanh %158 : vector<16x128xf32>
    %160 = vector.extract_strided_slice %145 {offsets = [0, 384], sizes = [16, 128], strides = [1, 1]} : vector<16x512xf32> to vector<16x128xf32>
    %161 = arith.negf %160 : vector<16x128xf32>
    %162 = math.exp %161 : vector<16x128xf32>
    %cst_50 = arith.constant 1.000000e+00 : f32
    %163 = vector.broadcast %cst_50 : f32 to vector<16x128xf32>
    %164 = arith.addf %163, %162 : vector<16x128xf32>
    %165 = arith.divf %163, %164 : vector<16x128xf32>
    %166 = arith.mulf %157, %136 : vector<16x128xf32>
    %167 = arith.mulf %151, %159 : vector<16x128xf32>
    %168 = arith.addf %166, %167 : vector<16x128xf32>
    %169 = math.tanh %168 : vector<16x128xf32>
    %170 = arith.mulf %165, %169 : vector<16x128xf32>
    %c5_i32 = arith.constant 5 : i32
    %171 = arith.index_cast %c5_i32 : i32 to index
    %c0_51 = arith.constant 0 : index
    %c0_52 = arith.constant 0 : index
    %172 = vector.load %arg6[%171, %c0_51, %c0_52] : memref<8x16x512xf32, #tpu.memory_space<vmem>>, vector<1x16x512xf32>
    %173 = vector.shape_cast %172 : vector<1x16x512xf32> to vector<16x512xf32>
    %174 = arith.truncf %170 : vector<16x128xf32> to vector<16x128xbf16>
    %c0_53 = arith.constant 0 : index
    %c0_54 = arith.constant 0 : index
    %175 = vector.load %arg2[%c0_53, %c0_54] : memref<128x512xbf16, #tpu.memory_space<vmem>>, vector<128x512xbf16>
    %cst_55 = arith.constant dense<0.000000e+00> : vector<16x512xf32>
    %176 = tpu.matmul %174, %175, %cst_55 {dimension_numbers = #tpu.dot_dimension_numbers<[1], [0], [0], [1], [0, 0, 1, 1], [], []>} : vector<16x128xbf16>, vector<128x512xbf16>, vector<16x512xf32> -> vector<16x512xf32>
    %177 = arith.addf %173, %176 : vector<16x512xf32>
    %178 = vector.extract_strided_slice %177 {offsets = [0, 0], sizes = [16, 128], strides = [1, 1]} : vector<16x512xf32> to vector<16x128xf32>
    %179 = arith.negf %178 : vector<16x128xf32>
    %180 = math.exp %179 : vector<16x128xf32>
    %cst_56 = arith.constant 1.000000e+00 : f32
    %181 = vector.broadcast %cst_56 : f32 to vector<16x128xf32>
    %182 = arith.addf %181, %180 : vector<16x128xf32>
    %183 = arith.divf %181, %182 : vector<16x128xf32>
    %184 = vector.extract_strided_slice %177 {offsets = [0, 128], sizes = [16, 128], strides = [1, 1]} : vector<16x512xf32> to vector<16x128xf32>
    %185 = arith.negf %184 : vector<16x128xf32>
    %186 = math.exp %185 : vector<16x128xf32>
    %cst_57 = arith.constant 1.000000e+00 : f32
    %187 = vector.broadcast %cst_57 : f32 to vector<16x128xf32>
    %188 = arith.addf %187, %186 : vector<16x128xf32>
    %189 = arith.divf %187, %188 : vector<16x128xf32>
    %190 = vector.extract_strided_slice %177 {offsets = [0, 256], sizes = [16, 128], strides = [1, 1]} : vector<16x512xf32> to vector<16x128xf32>
    %191 = math.tanh %190 : vector<16x128xf32>
    %192 = vector.extract_strided_slice %177 {offsets = [0, 384], sizes = [16, 128], strides = [1, 1]} : vector<16x512xf32> to vector<16x128xf32>
    %193 = arith.negf %192 : vector<16x128xf32>
    %194 = math.exp %193 : vector<16x128xf32>
    %cst_58 = arith.constant 1.000000e+00 : f32
    %195 = vector.broadcast %cst_58 : f32 to vector<16x128xf32>
    %196 = arith.addf %195, %194 : vector<16x128xf32>
    %197 = arith.divf %195, %196 : vector<16x128xf32>
    %198 = arith.mulf %189, %168 : vector<16x128xf32>
    %199 = arith.mulf %183, %191 : vector<16x128xf32>
    %200 = arith.addf %198, %199 : vector<16x128xf32>
    %201 = math.tanh %200 : vector<16x128xf32>
    %202 = arith.mulf %197, %201 : vector<16x128xf32>
    %c6_i32 = arith.constant 6 : i32
    %203 = arith.index_cast %c6_i32 : i32 to index
    %c0_59 = arith.constant 0 : index
    %c0_60 = arith.constant 0 : index
    %204 = vector.load %arg6[%203, %c0_59, %c0_60] : memref<8x16x512xf32, #tpu.memory_space<vmem>>, vector<1x16x512xf32>
    %205 = vector.shape_cast %204 : vector<1x16x512xf32> to vector<16x512xf32>
    %206 = arith.truncf %202 : vector<16x128xf32> to vector<16x128xbf16>
    %c0_61 = arith.constant 0 : index
    %c0_62 = arith.constant 0 : index
    %207 = vector.load %arg2[%c0_61, %c0_62] : memref<128x512xbf16, #tpu.memory_space<vmem>>, vector<128x512xbf16>
    %cst_63 = arith.constant dense<0.000000e+00> : vector<16x512xf32>
    %208 = tpu.matmul %206, %207, %cst_63 {dimension_numbers = #tpu.dot_dimension_numbers<[1], [0], [0], [1], [0, 0, 1, 1], [], []>} : vector<16x128xbf16>, vector<128x512xbf16>, vector<16x512xf32> -> vector<16x512xf32>
    %209 = arith.addf %205, %208 : vector<16x512xf32>
    %210 = vector.extract_strided_slice %209 {offsets = [0, 0], sizes = [16, 128], strides = [1, 1]} : vector<16x512xf32> to vector<16x128xf32>
    %211 = arith.negf %210 : vector<16x128xf32>
    %212 = math.exp %211 : vector<16x128xf32>
    %cst_64 = arith.constant 1.000000e+00 : f32
    %213 = vector.broadcast %cst_64 : f32 to vector<16x128xf32>
    %214 = arith.addf %213, %212 : vector<16x128xf32>
    %215 = arith.divf %213, %214 : vector<16x128xf32>
    %216 = vector.extract_strided_slice %209 {offsets = [0, 128], sizes = [16, 128], strides = [1, 1]} : vector<16x512xf32> to vector<16x128xf32>
    %217 = arith.negf %216 : vector<16x128xf32>
    %218 = math.exp %217 : vector<16x128xf32>
    %cst_65 = arith.constant 1.000000e+00 : f32
    %219 = vector.broadcast %cst_65 : f32 to vector<16x128xf32>
    %220 = arith.addf %219, %218 : vector<16x128xf32>
    %221 = arith.divf %219, %220 : vector<16x128xf32>
    %222 = vector.extract_strided_slice %209 {offsets = [0, 256], sizes = [16, 128], strides = [1, 1]} : vector<16x512xf32> to vector<16x128xf32>
    %223 = math.tanh %222 : vector<16x128xf32>
    %224 = vector.extract_strided_slice %209 {offsets = [0, 384], sizes = [16, 128], strides = [1, 1]} : vector<16x512xf32> to vector<16x128xf32>
    %225 = arith.negf %224 : vector<16x128xf32>
    %226 = math.exp %225 : vector<16x128xf32>
    %cst_66 = arith.constant 1.000000e+00 : f32
    %227 = vector.broadcast %cst_66 : f32 to vector<16x128xf32>
    %228 = arith.addf %227, %226 : vector<16x128xf32>
    %229 = arith.divf %227, %228 : vector<16x128xf32>
    %230 = arith.mulf %221, %200 : vector<16x128xf32>
    %231 = arith.mulf %215, %223 : vector<16x128xf32>
    %232 = arith.addf %230, %231 : vector<16x128xf32>
    %233 = math.tanh %232 : vector<16x128xf32>
    %234 = arith.mulf %229, %233 : vector<16x128xf32>
    %c7_i32 = arith.constant 7 : i32
    %235 = arith.index_cast %c7_i32 : i32 to index
    %c0_67 = arith.constant 0 : index
    %c0_68 = arith.constant 0 : index
    %236 = vector.load %arg6[%235, %c0_67, %c0_68] : memref<8x16x512xf32, #tpu.memory_space<vmem>>, vector<1x16x512xf32>
    %237 = vector.shape_cast %236 : vector<1x16x512xf32> to vector<16x512xf32>
    %238 = arith.truncf %234 : vector<16x128xf32> to vector<16x128xbf16>
    %c0_69 = arith.constant 0 : index
    %c0_70 = arith.constant 0 : index
    %239 = vector.load %arg2[%c0_69, %c0_70] : memref<128x512xbf16, #tpu.memory_space<vmem>>, vector<128x512xbf16>
    %cst_71 = arith.constant dense<0.000000e+00> : vector<16x512xf32>
    %240 = tpu.matmul %238, %239, %cst_71 {dimension_numbers = #tpu.dot_dimension_numbers<[1], [0], [0], [1], [0, 0, 1, 1], [], []>} : vector<16x128xbf16>, vector<128x512xbf16>, vector<16x512xf32> -> vector<16x512xf32>
    %241 = arith.addf %237, %240 : vector<16x512xf32>
    %242 = vector.extract_strided_slice %241 {offsets = [0, 0], sizes = [16, 128], strides = [1, 1]} : vector<16x512xf32> to vector<16x128xf32>
    %243 = arith.negf %242 : vector<16x128xf32>
    %244 = math.exp %243 : vector<16x128xf32>
    %cst_72 = arith.constant 1.000000e+00 : f32
    %245 = vector.broadcast %cst_72 : f32 to vector<16x128xf32>
    %246 = arith.addf %245, %244 : vector<16x128xf32>
    %247 = arith.divf %245, %246 : vector<16x128xf32>
    %248 = vector.extract_strided_slice %241 {offsets = [0, 128], sizes = [16, 128], strides = [1, 1]} : vector<16x512xf32> to vector<16x128xf32>
    %249 = arith.negf %248 : vector<16x128xf32>
    %250 = math.exp %249 : vector<16x128xf32>
    %cst_73 = arith.constant 1.000000e+00 : f32
    %251 = vector.broadcast %cst_73 : f32 to vector<16x128xf32>
    %252 = arith.addf %251, %250 : vector<16x128xf32>
    %253 = arith.divf %251, %252 : vector<16x128xf32>
    %254 = vector.extract_strided_slice %241 {offsets = [0, 256], sizes = [16, 128], strides = [1, 1]} : vector<16x512xf32> to vector<16x128xf32>
    %255 = math.tanh %254 : vector<16x128xf32>
    %256 = vector.extract_strided_slice %241 {offsets = [0, 384], sizes = [16, 128], strides = [1, 1]} : vector<16x512xf32> to vector<16x128xf32>
    %257 = arith.negf %256 : vector<16x128xf32>
    %258 = math.exp %257 : vector<16x128xf32>
    %cst_74 = arith.constant 1.000000e+00 : f32
    %259 = vector.broadcast %cst_74 : f32 to vector<16x128xf32>
    %260 = arith.addf %259, %258 : vector<16x128xf32>
    %261 = arith.divf %259, %260 : vector<16x128xf32>
    %262 = arith.mulf %253, %232 : vector<16x128xf32>
    %263 = arith.mulf %247, %255 : vector<16x128xf32>
    %264 = arith.addf %262, %263 : vector<16x128xf32>
    %265 = math.tanh %264 : vector<16x128xf32>
    %266 = arith.mulf %261, %265 : vector<16x128xf32>
    %c8_i32 = arith.constant 8 : i32
    %c0_75 = arith.constant 0 : index
    %c0_76 = arith.constant 0 : index
    %267 = vector.load %arg4[%c0_75, %c0_76] : memref<16x128xf32, #tpu.memory_space<vmem>>, vector<16x128xf32>
    tpu.vector_store %arg4[%c0_75, %c0_76], %266 {strides = array<i32>} : memref<16x128xf32, #tpu.memory_space<vmem>>, vector<16x128xf32>,
    %c0_77 = arith.constant 0 : index
    %c0_78 = arith.constant 0 : index
    %268 = vector.load %arg5[%c0_77, %c0_78] : memref<16x128xf32, #tpu.memory_space<vmem>>, vector<16x128xf32>
    tpu.vector_store %arg5[%c0_77, %c0_78], %264 {strides = array<i32>} : memref<16x128xf32, #tpu.memory_space<vmem>>, vector<16x128xf32>,
    return
  }
}

</mosaic_0001>

<llo_original>
// kernel: tpu_custom_call.1
$region0: #{tpu_custom_call.1}
  #allocation0 [shape = 'u32[]', space=smem, size = 0x4, offset = 0x4, fixed_abs, tag = 'smem constant byte address 0x4 - core index']
  #allocation1 [shape = 'u32[144,128]{1,0:T(1,128)}', space=vmem, size = 0x12000, scoped, tag = 'internal scratch']
  #allocation2 [shape = 'f32[8,16,512]{2,1,0:T(8,128)}', space=vmem, size = 0x40000, scoped, tag = 'scratch operand']
  %s0 = inlined_call_operand.hbm [shape: bf16[8,16,128], index: 0, kind: input, shape index: {}]
  %s1 = inlined_call_operand.hbm [shape: bf16[128,512], index: 1, kind: input, shape index: {}]
  %s2 = inlined_call_operand.hbm [shape: bf16[128,512], index: 2, kind: input, shape index: {}]
  %s3 = inlined_call_operand.vmem [shape: f32[1,512], index: 3, kind: input, shape index: {}]
  %s4 = inlined_call_operand.hbm [shape: f32[16,128], index: 4, kind: output, shape index: {0}]
  %s5 = inlined_call_operand.hbm [shape: f32[16,128], index: 5, kind: output, shape index: {1}]
  %6 = xla_tuple %s4, %s5
  %s7 = sld [smem:[#allocation0]]
  $region46: #{tpu_custom_call.1} parent=0
    _
  %s9 = ssub.s32 1, %s7
  %s10 = scalar_select 0, %s9, %s7
  $region1: #{tpu_custom_call.1} parent=0
    #allocation3 [shape = 'u8[32768]{0}', space=vmem, size = 0x8000, scoped, tag = 'input window, operand 0, single buffered']
    #allocation4 [shape = 's32[1]{0}', space=sflag, size = 0x4, scoped, tag = 'scoped memory for tpu_custom_call.1']
    #allocation5 [shape = 's32[1]{0}', space=sflag, size = 0x4, scoped, tag = 'scoped memory for tpu_custom_call.1']
    #allocation6 [shape = 'u8[131072]{0}', space=vmem, size = 0x20000, scoped, tag = 'input window, operand 1, single buffered']
    #allocation7 [shape = 's32[1]{0}', space=sflag, size = 0x4, scoped, tag = 'scoped memory for tpu_custom_call.1']
    #allocation8 [shape = 'u8[131072]{0}', space=vmem, size = 0x20000, scoped, tag = 'input window, operand 2, single buffered']
    #allocation9 [shape = 'u8[8192]{0}', space=vmem, size = 0x2000, scoped, tag = 'output window, operand 0, single buffered']
    #allocation10 [shape = 'u8[8192]{0}', space=vmem, size = 0x2000, scoped, tag = 'output window, operand 1, single buffered']
    #allocation11 [shape = 's32[1]{0}', space=sflag, size = 0x4, scoped, tag = 'scoped memory for tpu_custom_call.1']
    %11 = vsyncpa [#allocation4], 0
    %12 = vsyncpa [#allocation7], 0
    %13 = vsyncpa [#allocation5], 0
    %14 = vsyncpa [#allocation11], 0
    // Predicated region
    $region2: #{tpu_custom_call.1} parent=1 // pred_check
      _
    $region3: #{tpu_custom_call.1} parent=1 // pred_check_branch
      %16 = sbr.rel (0) target = $region5
    $region4: #{tpu_custom_call.1} parent=1 // pred_region
      %s18 = ssub.s32 1024, 1024
      %19 = vsyncadd [#allocation4], %s18
      %s20 = sshll.u32 [#allocation3], 4
      %s21 = int_to_ptr.vmem [resolvable:$true] %s20
      %26 = dma.hbm_to_vmem [thread:$0]  %s0, 1024, %s21, [#allocation4], 64, 64, 4
    $region5: #{tpu_custom_call.1} parent=1 // pred_fallthru
      _
    // Predicated region
    $region6: #{tpu_custom_call.1} parent=1 // pred_check
      _
    $region7: #{tpu_custom_call.1} parent=1 // pred_check_branch
      %28 = sbr.rel (0) target = $region9
    $region8: #{tpu_custom_call.1} parent=1 // pred_region
      %s30 = ssub.s32 4096, 4096
      %31 = vsyncadd [#allocation7], %s30
      %s32 = sshll.u32 [#allocation6], 4
      %s33 = int_to_ptr.vmem [resolvable:$true] %s32
      %38 = dma.hbm_to_vmem [thread:$0]  %s1, 4096, %s33, [#allocation7], 256, 256, 16
    $region9: #{tpu_custom_call.1} parent=1 // pred_fallthru
      _
    // Predicated region
    $region10: #{tpu_custom_call.1} parent=1 // pred_check
      _
    $region11: #{tpu_custom_call.1} parent=1 // pred_check_branch
      %40 = sbr.rel (0) target = $region13
    $region12: #{tpu_custom_call.1} parent=1 // pred_region
      %s42 = ssub.s32 4096, 4096
      %43 = vsyncadd [#allocation7], %s42
      %s44 = sshll.u32 [#allocation8], 4
      %s45 = int_to_ptr.vmem [resolvable:$true] %s44
      %50 = dma.hbm_to_vmem [thread:$0]  %s2, 4096, %s45, [#allocation7], 256, 256, 16
    $region13: #{tpu_custom_call.1} parent=1 // pred_fallthru
      _
    // Predicated region
    $region14: #{tpu_custom_call.1} parent=1 // pred_check
      _
    $region15: #{tpu_custom_call.1} parent=1 // pred_check_branch
      %52 = sbr.rel (0) target = $region17
    $region16: #{tpu_custom_call.1} parent=1 // pred_region
      _
    $region17: #{tpu_custom_call.1} parent=1 // pred_fallthru
      _
    // Predicated region
    $region18: #{tpu_custom_call.1} parent=1 // pred_check
      _
    $region19: #{tpu_custom_call.1} parent=1 // pred_check_branch
      %54 = sbr.rel (0) target = $region21
    $region20: #{tpu_custom_call.1} parent=1 // pred_region
      %55 = dma.done [#allocation4], 1024
    $region21: #{tpu_custom_call.1} parent=1 // pred_fallthru
      _
    // Predicated region
    $region22: #{tpu_custom_call.1} parent=1 // pred_check
      _
    $region23: #{tpu_custom_call.1} parent=1 // pred_check_branch
      %57 = sbr.rel (0) target = $region25
    $region24: #{tpu_custom_call.1} parent=1 // pred_region
      %58 = dma.done [#allocation7], 4096
    $region25: #{tpu_custom_call.1} parent=1 // pred_fallthru
      _
    // Predicated region
    $region26: #{tpu_custom_call.1} parent=1 // pred_check
      _
    $region27: #{tpu_custom_call.1} parent=1 // pred_check_branch
      %60 = sbr.rel (0) target = $region29
    $region28: #{tpu_custom_call.1} parent=1 // pred_region
      %61 = dma.done [#allocation7], 4096
    $region29: #{tpu_custom_call.1} parent=1 // pred_fallthru
      _
    %v63 = vld [vmem:[#allocation3] sm:$0xf]
    %v64 = vld [vmem:[#allocation3 + $0x4] sm:$0xf]
    %v65 = vld [vmem:[#allocation3 + $0x8] sm:$0xf]
    %v66 = vld [vmem:[#allocation3 + $0xc] sm:$0xf]
    %v67 = vld [vmem:[#allocation3 + $0x10] sm:$0xf]
    %v68 = vld [vmem:[#allocation3 + $0x14] sm:$0xf]
    %v69 = vld [vmem:[#allocation3 + $0x18] sm:$0xf]
    %v70 = vld [vmem:[#allocation3 + $0x1c] sm:$0xf]
    %v71 = vld [vmem:[#allocation3 + $0x20] sm:$0xf]
    %v72 = vld [vmem:[#allocation3 + $0x24] sm:$0xf]
    %v73 = vld [vmem:[#allocation3 + $0x28] sm:$0xf]
    %v74 = vld [vmem:[#allocation3 + $0x2c] sm:$0xf]
    %v75 = vld [vmem:[#allocation3 + $0x30] sm:$0xf]
    %v76 = vld [vmem:[#allocation3 + $0x34] sm:$0xf]
    %v77 = vld [vmem:[#allocation3 + $0x38] sm:$0xf]
    %v78 = vld [vmem:[#allocation3 + $0x3c] sm:$0xf]
    %v79 = vld [vmem:[#allocation6] sm:$0xff]
    %v80 = vld [vmem:[#allocation6 + $0x8] sm:$0xff]
    %v81 = vld [vmem:[#allocation6 + $0x10] sm:$0xff]
    %v82 = vld [vmem:[#allocation6 + $0x18] sm:$0xff]
    %v83 = vld [vmem:[#allocation6 + $0x20] sm:$0xff]
    %v84 = vld [vmem:[#allocation6 + $0x28] sm:$0xff]
    %v85 = vld [vmem:[#allocation6 + $0x30] sm:$0xff]
    %v86 = vld [vmem:[#allocation6 + $0x38] sm:$0xff]
    %v87 = vld [vmem:[#allocation6 + $0x40] sm:$0xff]
    %v88 = vld [vmem:[#allocation6 + $0x48] sm:$0xff]
    %v89 = vld [vmem:[#allocation6 + $0x50] sm:$0xff]
    %v90 = vld [vmem:[#allocation6 + $0x58] sm:$0xff]
    %v91 = vld [vmem:[#allocation6 + $0x60] sm:$0xff]
    %v92 = vld [vmem:[#allocation6 + $0x68] sm:$0xff]
    %v93 = vld [vmem:[#allocation6 + $0x70] sm:$0xff]
    %v94 = vld [vmem:[#allocation6 + $0x78] sm:$0xff]
    %v95 = vld [vmem:[#allocation6 + $0x80] sm:$0xff]
    %v96 = vld [vmem:[#allocation6 + $0x88] sm:$0xff]
    %v97 = vld [vmem:[#allocation6 + $0x90] sm:$0xff]
    %v98 = vld [vmem:[#allocation6 + $0x98] sm:$0xff]
    %v99 = vld [vmem:[#allocation6 + $0xa0] sm:$0xff]
    %v100 = vld [vmem:[#allocation6 + $0xa8] sm:$0xff]
    %v101 = vld [vmem:[#allocation6 + $0xb0] sm:$0xff]
    %v102 = vld [vmem:[#allocation6 + $0xb8] sm:$0xff]
    %v103 = vld [vmem:[#allocation6 + $0xc0] sm:$0xff]
    %v104 = vld [vmem:[#allocation6 + $0xc8] sm:$0xff]
    %v105 = vld [vmem:[#allocation6 + $0xd0] sm:$0xff]
    %v106 = vld [vmem:[#allocation6 + $0xd8] sm:$0xff]
    %v107 = vld [vmem:[#allocation6 + $0xe0] sm:$0xff]
    %v108 = vld [vmem:[#allocation6 + $0xe8] sm:$0xff]
    %v109 = vld [vmem:[#allocation6 + $0xf0] sm:$0xff]
    %v110 = vld [vmem:[#allocation6 + $0xf8] sm:$0xff]
    %v111 = vld [vmem:[%s3] sm:$0xf]
    %v113 = vlaneseq
    %v114 = vshrl.u32 %v113, 7
    %v115 = vsub.s32 0, %v114
    %v116 = vrot.slane %v111, %v115
    %v117 = vlaneseq
    %v118 = vshrl.u32 %v117, 7
    %v119 = vsub.s32 1, %v118
    %v120 = vrot.slane %v111, %v119
    %v121 = vlaneseq
    %v122 = vshrl.u32 %v121, 7
    %v123 = vsub.s32 2, %v122
    %v124 = vrot.slane %v111, %v123
    %v125 = vlaneseq
    %v126 = vshrl.u32 %v125, 7
    %v127 = vsub.s32 3, %v126
    %v128 = vrot.slane %v111, %v127
    %v149 = vunpack.c.l.b16 %v63
    %v150 = vunpack.c.l.b16 %v64
    %v151 = vunpack.c.l.b16 %v65
    %v152 = vunpack.c.l.b16 %v66
    %v153 = vunpack.c.l.b16 %v67
    %v154 = vunpack.c.l.b16 %v68
    %v155 = vunpack.c.l.b16 %v69
    %v156 = vunpack.c.l.b16 %v70
    %v157 = vunpack.c.l.b16 %v71
    %v158 = vunpack.c.l.b16 %v72
    %v159 = vunpack.c.l.b16 %v73
    %v160 = vunpack.c.l.b16 %v74
    %v161 = vunpack.c.l.b16 %v75
    %v162 = vunpack.c.l.b16 %v76
    %v163 = vunpack.c.l.b16 %v77
    %v164 = vunpack.c.l.b16 %v78
    %v165 = vpack.c.b16 %v150, %v149
    %v166 = vpack.c.b16 %v152, %v151
    %v167 = vpack.c.b16 %v154, %v153
    %v168 = vpack.c.b16 %v156, %v155
    %v169 = vpack.c.b16 %v158, %v157
    %v170 = vpack.c.b16 %v160, %v159
    %v171 = vpack.c.b16 %v162, %v161
    %v172 = vpack.c.b16 %v164, %v163
    %v213 = vunpack.c.l.b16 %v79
    %v214 = vunpack.c.h.b16 %v79
    %v215 = vunpack.c.l.b16 %v80
    %v216 = vunpack.c.h.b16 %v80
    %v217 = vunpack.c.l.b16 %v81
    %v218 = vunpack.c.h.b16 %v81
    %v219 = vunpack.c.l.b16 %v82
    %v220 = vunpack.c.h.b16 %v82
    %v221 = vunpack.c.l.b16 %v83
    %v222 = vunpack.c.h.b16 %v83
    %v223 = vunpack.c.l.b16 %v84
    %v224 = vunpack.c.h.b16 %v84
    %v225 = vunpack.c.l.b16 %v85
    %v226 = vunpack.c.h.b16 %v85
    %v227 = vunpack.c.l.b16 %v86
    %v228 = vunpack.c.h.b16 %v86
    %v229 = vunpack.c.l.b16 %v87
    %v230 = vunpack.c.h.b16 %v87
    %v231 = vunpack.c.l.b16 %v88
    %v232 = vunpack.c.h.b16 %v88
    %v233 = vunpack.c.l.b16 %v89
    %v234 = vunpack.c.h.b16 %v89
    %v235 = vunpack.c.l.b16 %v90
    %v236 = vunpack.c.h.b16 %v90
    %v237 = vunpack.c.l.b16 %v91
    %v238 = vunpack.c.h.b16 %v91
    %v239 = vunpack.c.l.b16 %v92
    %v240 = vunpack.c.h.b16 %v92
    %v241 = vunpack.c.l.b16 %v93
    %v242 = vunpack.c.h.b16 %v93
    %v243 = vunpack.c.l.b16 %v94
    %v244 = vunpack.c.h.b16 %v94
    %v245 = vunpack.c.l.b16 %v95
    %v246 = vunpack.c.h.b16 %v95
    %v247 = vunpack.c.l.b16 %v96
    %v248 = vunpack.c.h.b16 %v96
    %v249 = vunpack.c.l.b16 %v97
    %v250 = vunpack.c.h.b16 %v97
    %v251 = vunpack.c.l.b16 %v98
    %v252 = vunpack.c.h.b16 %v98
    %v253 = vunpack.c.l.b16 %v99
    %v254 = vunpack.c.h.b16 %v99
    %v255 = vunpack.c.l.b16 %v100
    %v256 = vunpack.c.h.b16 %v100
    %v257 = vunpack.c.l.b16 %v101
    %v258 = vunpack.c.h.b16 %v101
    %v259 = vunpack.c.l.b16 %v102
    %v260 = vunpack.c.h.b16 %v102
    %v261 = vunpack.c.l.b16 %v103
    %v262 = vunpack.c.h.b16 %v103
    %v263 = vunpack.c.l.b16 %v104
    %v264 = vunpack.c.h.b16 %v104
    %v265 = vunpack.c.l.b16 %v105
    %v266 = vunpack.c.h.b16 %v105
    %v267 = vunpack.c.l.b16 %v106
    %v268 = vunpack.c.h.b16 %v106
    %v269 = vunpack.c.l.b16 %v107
    %v270 = vunpack.c.h.b16 %v107
    %v271 = vunpack.c.l.b16 %v108
    %v272 = vunpack.c.h.b16 %v108
    %v273 = vunpack.c.l.b16 %v109
    %v274 = vunpack.c.h.b16 %v109
    %v275 = vunpack.c.l.b16 %v110
    %v276 = vunpack.c.h.b16 %v110
    %v277 = vpack.c.b16 %v217, %v213
    %v278 = vpack.c.b16 %v218, %v214
    %v279 = vpack.c.b16 %v219, %v215
    %v280 = vpack.c.b16 %v220, %v216
    %v281 = vpack.c.b16 %v225, %v221
    %v282 = vpack.c.b16 %v226, %v222
    %v283 = vpack.c.b16 %v227, %v223
    %v284 = vpack.c.b16 %v228, %v224
    %v285 = vpack.c.b16 %v233, %v229
    %v286 = vpack.c.b16 %v234, %v230
    %v287 = vpack.c.b16 %v235, %v231
    %v288 = vpack.c.b16 %v236, %v232
    %v289 = vpack.c.b16 %v241, %v237
    %v290 = vpack.c.b16 %v242, %v238
    %v291 = vpack.c.b16 %v243, %v239
    %v292 = vpack.c.b16 %v244, %v240
    %v293 = vpack.c.b16 %v249, %v245
    %v294 = vpack.c.b16 %v250, %v246
    %v295 = vpack.c.b16 %v251, %v247
    %v296 = vpack.c.b16 %v252, %v248
    %v297 = vpack.c.b16 %v257, %v253
    %v298 = vpack.c.b16 %v258, %v254
    %v299 = vpack.c.b16 %v259, %v255
    %v300 = vpack.c.b16 %v260, %v256
    %v301 = vpack.c.b16 %v265, %v261
    %v302 = vpack.c.b16 %v266, %v262
    %v303 = vpack.c.b16 %v267, %v263
    %v304 = vpack.c.b16 %v268, %v264
    %v305 = vpack.c.b16 %v273, %v269
    %v306 = vpack.c.b16 %v274, %v270
    %v307 = vpack.c.b16 %v275, %v271
    %v308 = vpack.c.b16 %v276, %v272
    %341 = vmatprep.subr.bf16.mxu0 %v306
    %342 = vmatpush1.bf16.msra.mxu0 %v305
    %343 = vmatprep.subr.bf16.mxu0 %v302
    %344 = vmatpush1.bf16.msra.mxu0 %v301
    %345 = vmatprep.subr.bf16.mxu0 %v298
    %346 = vmatpush1.bf16.msra.mxu0 %v297
    %347 = vmatprep.subr.bf16.mxu0 %v294
    %348 = vmatpush1.bf16.msra.mxu0 %v293
    %349 = vmatprep.subr.bf16.mxu0 %v290
    %350 = vmatpush1.bf16.msra.mxu0 %v289
    %351 = vmatprep.subr.bf16.mxu0 %v286
    %352 = vmatpush1.bf16.msra.mxu0 %v285
    %353 = vmatprep.subr.bf16.mxu0 %v282
    %354 = vmatpush1.bf16.msra.mxu0 %v281
    %355 = vmatprep.subr.bf16.mxu0 %v278
    %356 = vmatpush1.bf16.msra.mxu0 %v277
    %357 = vmatprep.subr.bf16.mxu0 0
    %358 = vmatpush2.bf16.msra.mxu0 0
    %359 = vmatprep.subr.bf16.mxu0 0
    %360 = vmatpush2.bf16.msra.mxu0 0
    %361 = vmatprep.subr.bf16.mxu0 0
    %362 = vmatpush2.bf16.msra.mxu0 0
    %363 = vmatprep.subr.bf16.mxu0 0
    %364 = vmatpush2.bf16.msra.mxu0 0
    %365 = vmatprep.subr.bf16.mxu0 0
    %366 = vmatpush2.bf16.msra.mxu0 0
    %367 = vmatprep.subr.bf16.mxu0 0
    %368 = vmatpush2.bf16.msra.mxu0 0
    %369 = vmatprep.subr.bf16.mxu0 0
    %370 = vmatpush2.bf16.msra.mxu0 0
    %371 = vmatprep.subr.bf16.mxu0 0
    %372 = vmatpush2.bf16.msra.mxu0 0
    %373 = vmatprep.mubr.bf16.mxu0 0
    %374 = vmatmul.mubr.bf16.gmra.mxu0 %v165
    %v375 = vpop.f32.mrf.mxu0
    %v376 = vadd.f32 %v116, %v375
    %v377 = vpop.f32.mrf.mxu0
    %v378 = vadd.f32 %v120, %v377
    %v379 = vpop.f32.mrf.mxu0
    %v380 = vadd.f32 %v116, %v379
    %v381 = vpop.f32.mrf.mxu0
    %v382 = vadd.f32 %v120, %v381
    %383 = vmatprep.mubr.bf16.mxu0 0
    %384 = vmatmul.mubr.bf16.gmra.mxu0 %v166
    %v385 = vpop.f32.mrf.mxu0
    %v386 = vadd.f32 %v116, %v385
    %v387 = vpop.f32.mrf.mxu0
    %v388 = vadd.f32 %v120, %v387
    %v389 = vpop.f32.mrf.mxu0
    %v390 = vadd.f32 %v116, %v389
    %v391 = vpop.f32.mrf.mxu0
    %v392 = vadd.f32 %v120, %v391
    %393 = vmatprep.mubr.bf16.mxu0 0
    %394 = vmatmul.mubr.bf16.gmra.mxu0 %v167
    %v395 = vpop.f32.mrf.mxu0
    %v396 = vadd.f32 %v116, %v395
    %v397 = vpop.f32.mrf.mxu0
    %v398 = vadd.f32 %v120, %v397
    %v399 = vpop.f32.mrf.mxu0
    %v400 = vadd.f32 %v116, %v399
    %v401 = vpop.f32.mrf.mxu0
    %v402 = vadd.f32 %v120, %v401
    %403 = vmatprep.mubr.bf16.mxu0 0
    %404 = vmatmul.mubr.bf16.gmra.mxu0 %v168
    %v405 = vpop.f32.mrf.mxu0
    %v406 = vadd.f32 %v116, %v405
    %v407 = vpop.f32.mrf.mxu0
    %v408 = vadd.f32 %v120, %v407
    %v409 = vpop.f32.mrf.mxu0
    %v410 = vadd.f32 %v116, %v409
    %v411 = vpop.f32.mrf.mxu0
    %v412 = vadd.f32 %v120, %v411
    %413 = vmatprep.mubr.bf16.mxu0 0
    %414 = vmatmul.mubr.bf16.gmra.mxu0 %v169
    %v415 = vpop.f32.mrf.mxu0
    %v416 = vadd.f32 %v116, %v415
    %v417 = vpop.f32.mrf.mxu0
    %v418 = vadd.f32 %v120, %v417
    %v419 = vpop.f32.mrf.mxu0
    %v420 = vadd.f32 %v116, %v419
    %v421 = vpop.f32.mrf.mxu0
    %v422 = vadd.f32 %v120, %v421
    %423 = vmatprep.mubr.bf16.mxu0 0
    %424 = vmatmul.mubr.bf16.gmra.mxu0 %v170
    %v425 = vpop.f32.mrf.mxu0
    %v426 = vadd.f32 %v116, %v425
    %v427 = vpop.f32.mrf.mxu0
    %v428 = vadd.f32 %v120, %v427
    %v429 = vpop.f32.mrf.mxu0
    %v430 = vadd.f32 %v116, %v429
    %v431 = vpop.f32.mrf.mxu0
    %v432 = vadd.f32 %v120, %v431
    %433 = vmatprep.mubr.bf16.mxu0 0
    %434 = vmatmul.mubr.bf16.gmra.mxu0 %v171
    %v435 = vpop.f32.mrf.mxu0
    %v436 = vadd.f32 %v116, %v435
    %v437 = vpop.f32.mrf.mxu0
    %v438 = vadd.f32 %v120, %v437
    %v439 = vpop.f32.mrf.mxu0
    %v440 = vadd.f32 %v116, %v439
    %v441 = vpop.f32.mrf.mxu0
    %v442 = vadd.f32 %v120, %v441
    %443 = vmatprep.mubr.bf16.mxu0 0
    %444 = vmatmul.mubr.bf16.gmra.mxu0 %v172
    %v445 = vpop.f32.mrf.mxu0
    %v446 = vadd.f32 %v116, %v445
    %v447 = vpop.f32.mrf.mxu0
    %v448 = vadd.f32 %v120, %v447
    %v449 = vpop.f32.mrf.mxu0
    %v450 = vadd.f32 %v116, %v449
    %v451 = vpop.f32.mrf.mxu0
    %v452 = vadd.f32 %v120, %v451
    %453 = vdwg.mxu0
    %454 = vmatprep.subr.bf16.mxu0 %v308
    %455 = vmatpush1.bf16.msra.mxu0 %v307
    %456 = vmatprep.subr.bf16.mxu0 %v304
    %457 = vmatpush1.bf16.msra.mxu0 %v303
    %458 = vmatprep.subr.bf16.mxu0 %v300
    %459 = vmatpush1.bf16.msra.mxu0 %v299
    %460 = vmatprep.subr.bf16.mxu0 %v296
    %461 = vmatpush1.bf16.msra.mxu0 %v295
    %462 = vmatprep.subr.bf16.mxu0 %v292
    %463 = vmatpush1.bf16.msra.mxu0 %v291
    %464 = vmatprep.subr.bf16.mxu0 %v288
    %465 = vmatpush1.bf16.msra.mxu0 %v287
    %466 = vmatprep.subr.bf16.mxu0 %v284
    %467 = vmatpush1.bf16.msra.mxu0 %v283
    %468 = vmatprep.subr.bf16.mxu0 %v280
    %469 = vmatpush1.bf16.msra.mxu0 %v279
    %470 = vmatprep.subr.bf16.mxu0 0
    %471 = vmatpush2.bf16.msra.mxu0 0
    %472 = vmatprep.subr.bf16.mxu0 0
    %473 = vmatpush2.bf16.msra.mxu0 0
    %474 = vmatprep.subr.bf16.mxu0 0
    %475 = vmatpush2.bf16.msra.mxu0 0
    %476 = vmatprep.subr.bf16.mxu0 0
    %477 = vmatpush2.bf16.msra.mxu0 0
    %478 = vmatprep.subr.bf16.mxu0 0
    %479 = vmatpush2.bf16.msra.mxu0 0
    %480 = vmatprep.subr.bf16.mxu0 0
    %481 = vmatpush2.bf16.msra.mxu0 0
    %482 = vmatprep.subr.bf16.mxu0 0
    %483 = vmatpush2.bf16.msra.mxu0 0
    %484 = vmatprep.subr.bf16.mxu0 0
    %485 = vmatpush2.bf16.msra.mxu0 0
    %486 = vmatprep.mubr.bf16.mxu0 0
    %487 = vmatmul.mubr.bf16.gmra.mxu0 %v165
    %v488 = vpop.f32.mrf.mxu0
    %v489 = vadd.f32 %v124, %v488
    %v490 = vpop.f32.mrf.mxu0
    %v491 = vadd.f32 %v128, %v490
    %v492 = vpop.f32.mrf.mxu0
    %v493 = vadd.f32 %v124, %v492
    %v494 = vpop.f32.mrf.mxu0
    %v495 = vadd.f32 %v128, %v494
    %496 = vmatprep.mubr.bf16.mxu0 0
    %497 = vmatmul.mubr.bf16.gmra.mxu0 %v166
    %v498 = vpop.f32.mrf.mxu0
    %v499 = vadd.f32 %v124, %v498
    %v500 = vpop.f32.mrf.mxu0
    %v501 = vadd.f32 %v128, %v500
    %v502 = vpop.f32.mrf.mxu0
    %v503 = vadd.f32 %v124, %v502
    %v504 = vpop.f32.mrf.mxu0
    %v505 = vadd.f32 %v128, %v504
    %506 = vmatprep.mubr.bf16.mxu0 0
    %507 = vmatmul.mubr.bf16.gmra.mxu0 %v167
    %v508 = vpop.f32.mrf.mxu0
    %v509 = vadd.f32 %v124, %v508
    %v510 = vpop.f32.mrf.mxu0
    %v511 = vadd.f32 %v128, %v510
    %v512 = vpop.f32.mrf.mxu0
    %v513 = vadd.f32 %v124, %v512
    %v514 = vpop.f32.mrf.mxu0
    %v515 = vadd.f32 %v128, %v514
    %516 = vmatprep.mubr.bf16.mxu0 0
    %517 = vmatmul.mubr.bf16.gmra.mxu0 %v168
    %v518 = vpop.f32.mrf.mxu0
    %v519 = vadd.f32 %v124, %v518
    %v520 = vpop.f32.mrf.mxu0
    %v521 = vadd.f32 %v128, %v520
    %v522 = vpop.f32.mrf.mxu0
    %v523 = vadd.f32 %v124, %v522
    %v524 = vpop.f32.mrf.mxu0
    %v525 = vadd.f32 %v128, %v524
    %526 = vmatprep.mubr.bf16.mxu0 0
    %527 = vmatmul.mubr.bf16.gmra.mxu0 %v169
    %v528 = vpop.f32.mrf.mxu0
    %v529 = vadd.f32 %v124, %v528
    %v530 = vpop.f32.mrf.mxu0
    %v531 = vadd.f32 %v128, %v530
    %v532 = vpop.f32.mrf.mxu0
    %v533 = vadd.f32 %v124, %v532
    %v534 = vpop.f32.mrf.mxu0
    %v535 = vadd.f32 %v128, %v534
    %536 = vmatprep.mubr.bf16.mxu0 0
    %537 = vmatmul.mubr.bf16.gmra.mxu0 %v170
    %v538 = vpop.f32.mrf.mxu0
    %v539 = vadd.f32 %v124, %v538
    %v540 = vpop.f32.mrf.mxu0
    %v541 = vadd.f32 %v128, %v540
    %v542 = vpop.f32.mrf.mxu0
    %v543 = vadd.f32 %v124, %v542
    %v544 = vpop.f32.mrf.mxu0
    %v545 = vadd.f32 %v128, %v544
    %546 = vmatprep.mubr.bf16.mxu0 0
    %547 = vmatmul.mubr.bf16.gmra.mxu0 %v171
    %v548 = vpop.f32.mrf.mxu0
    %v549 = vadd.f32 %v124, %v548
    %v550 = vpop.f32.mrf.mxu0
    %v551 = vadd.f32 %v128, %v550
    %v552 = vpop.f32.mrf.mxu0
    %v553 = vadd.f32 %v124, %v552
    %v554 = vpop.f32.mrf.mxu0
    %v555 = vadd.f32 %v128, %v554
    %556 = vmatprep.mubr.bf16.mxu0 0
    %557 = vmatmul.mubr.bf16.gmra.mxu0 %v172
    %v558 = vpop.f32.mrf.mxu0
    %v559 = vadd.f32 %v124, %v558
    %v560 = vpop.f32.mrf.mxu0
    %v561 = vadd.f32 %v128, %v560
    %v562 = vpop.f32.mrf.mxu0
    %v563 = vadd.f32 %v124, %v562
    %v564 = vpop.f32.mrf.mxu0
    %v565 = vadd.f32 %v128, %v564
    %566 = vdwg.mxu0
    %567 = vst [vmem:[#allocation2] sm:$0xff] %v376
    %568 = vst [vmem:[#allocation2 + $0x8] sm:$0xff] %v378
    %569 = vst [vmem:[#allocation2 + $0x10] sm:$0xff] %v489
    %570 = vst [vmem:[#allocation2 + $0x18] sm:$0xff] %v491
    %571 = vst [vmem:[#allocation2 + $0x20] sm:$0xff] %v380
    %572 = vst [vmem:[#allocation2 + $0x28] sm:$0xff] %v382
    %573 = vst [vmem:[#allocation2 + $0x30] sm:$0xff] %v493
    %574 = vst [vmem:[#allocation2 + $0x38] sm:$0xff] %v495
    %575 = vst [vmem:[#allocation2 + $0x40] sm:$0xff] %v386
    %576 = vst [vmem:[#allocation2 + $0x48] sm:$0xff] %v388
    %577 = vst [vmem:[#allocation2 + $0x50] sm:$0xff] %v499
    %578 = vst [vmem:[#allocation2 + $0x58] sm:$0xff] %v501
    %579 = vst [vmem:[#allocation2 + $0x60] sm:$0xff] %v390
    %580 = vst [vmem:[#allocation2 + $0x68] sm:$0xff] %v392
    %581 = vst [vmem:[#allocation2 + $0x70] sm:$0xff] %v503
    %582 = vst [vmem:[#allocation2 + $0x78] sm:$0xff] %v505
    %583 = vst [vmem:[#allocation2 + $0x80] sm:$0xff] %v396
    %584 = vst [vmem:[#allocation2 + $0x88] sm:$0xff] %v398
    %585 = vst [vmem:[#allocation2 + $0x90] sm:$0xff] %v509
    %586 = vst [vmem:[#allocation2 + $0x98] sm:$0xff] %v511
    %587 = vst [vmem:[#allocation2 + $0xa0] sm:$0xff] %v400
    %588 = vst [vmem:[#allocation2 + $0xa8] sm:$0xff] %v402
    %589 = vst [vmem:[#allocation2 + $0xb0] sm:$0xff] %v513
    %590 = vst [vmem:[#allocation2 + $0xb8] sm:$0xff] %v515
    %591 = vst [vmem:[#allocation2 + $0xc0] sm:$0xff] %v406
    %592 = vst [vmem:[#allocation2 + $0xc8] sm:$0xff] %v408
    %593 = vst [vmem:[#allocation2 + $0xd0] sm:$0xff] %v519
    %594 = vst [vmem:[#allocation2 + $0xd8] sm:$0xff] %v521
    %595 = vst [vmem:[#allocation2 + $0xe0] sm:$0xff] %v410
    %596 = vst [vmem:[#allocation2 + $0xe8] sm:$0xff] %v412
    %597 = vst [vmem:[#allocation2 + $0xf0] sm:$0xff] %v523
    %598 = vst [vmem:[#allocation2 + $0xf8] sm:$0xff] %v525
    %599 = vst [vmem:[#allocation2 + $0x100] sm:$0xff] %v416
    %600 = vst [vmem:[#allocation2 + $0x108] sm:$0xff] %v418
    %601 = vst [vmem:[#allocation2 + $0x110] sm:$0xff] %v529
    %602 = vst [vmem:[#allocation2 + $0x118] sm:$0xff] %v531
    %603 = vst [vmem:[#allocation2 + $0x120] sm:$0xff] %v420
    %604 = vst [vmem:[#allocation2 + $0x128] sm:$0xff] %v422
    %605 = vst [vmem:[#allocation2 + $0x130] sm:$0xff] %v533
    %606 = vst [vmem:[#allocation2 + $0x138] sm:$0xff] %v535
    %607 = vst [vmem:[#allocation2 + $0x140] sm:$0xff] %v426
    %608 = vst [vmem:[#allocation2 + $0x148] sm:$0xff] %v428
    %609 = vst [vmem:[#allocation2 + $0x150] sm:$0xff] %v539
    %610 = vst [vmem:[#allocation2 + $0x158] sm:$0xff] %v541
    %611 = vst [vmem:[#allocation2 + $0x160] sm:$0xff] %v430
    %612 = vst [vmem:[#allocation2 + $0x168] sm:$0xff] %v432
    %613 = vst [vmem:[#allocation2 + $0x170] sm:$0xff] %v543
    %614 = vst [vmem:[#allocation2 + $0x178] sm:$0xff] %v545
    %615 = vst [vmem:[#allocation2 + $0x180] sm:$0xff] %v436
    %616 = vst [vmem:[#allocation2 + $0x188] sm:$0xff] %v438
    %617 = vst [vmem:[#allocation2 + $0x190] sm:$0xff] %v549
    %618 = vst [vmem:[#allocation2 + $0x198] sm:$0xff] %v551
    %619 = vst [vmem:[#allocation2 + $0x1a0] sm:$0xff] %v440
    %620 = vst [vmem:[#allocation2 + $0x1a8] sm:$0xff] %v442
    %621 = vst [vmem:[#allocation2 + $0x1b0] sm:$0xff] %v553
    %622 = vst [vmem:[#allocation2 + $0x1b8] sm:$0xff] %v555
    %623 = vst [vmem:[#allocation2 + $0x1c0] sm:$0xff] %v446
    %624 = vst [vmem:[#allocation2 + $0x1c8] sm:$0xff] %v448
    %625 = vst [vmem:[#allocation2 + $0x1d0] sm:$0xff] %v559
    %626 = vst [vmem:[#allocation2 + $0x1d8] sm:$0xff] %v561
    %627 = vst [vmem:[#allocation2 + $0x1e0] sm:$0xff] %v450
    %628 = vst [vmem:[#allocation2 + $0x1e8] sm:$0xff] %v452
    %629 = vst [vmem:[#allocation2 + $0x1f0] sm:$0xff] %v563
    %630 = vst [vmem:[#allocation2 + $0x1f8] sm:$0xff] %v565
    %v631 = vld [vmem:[#allocation2] sm:$0xff]
    %v632 = vld [vmem:[#allocation2 + $0x8] sm:$0xff]
    %v633 = vld [vmem:[#allocation2 + $0x10] sm:$0xff]
    %v634 = vld [vmem:[#allocation2 + $0x18] sm:$0xff]
    %v635 = vld [vmem:[#allocation2 + $0x20] sm:$0xff]
    %v636 = vld [vmem:[#allocation2 + $0x28] sm:$0xff]
    %v637 = vld [vmem:[#allocation2 + $0x30] sm:$0xff]
    %v638 = vld [vmem:[#allocation2 + $0x38] sm:$0xff]
    %v639 = vld [vmem:[#allocation8] sm:$0xff]
    %v640 = vld [vmem:[#allocation8 + $0x8] sm:$0xff]
    %v641 = vld [vmem:[#allocation8 + $0x10] sm:$0xff]
    %v642 = vld [vmem:[#allocation8 + $0x18] sm:$0xff]
    %v643 = vld [vmem:[#allocation8 + $0x20] sm:$0xff]
    %v644 = vld [vmem:[#allocation8 + $0x28] sm:$0xff]
    %v645 = vld [vmem:[#allocation8 + $0x30] sm:$0xff]
    %v646 = vld [vmem:[#allocation8 + $0x38] sm:$0xff]
    %v647 = vld [vmem:[#allocation8 + $0x40] sm:$0xff]
    %v648 = vld [vmem:[#allocation8 + $0x48] sm:$0xff]
    %v649 = vld [vmem:[#allocation8 + $0x50] sm:$0xff]
    %v650 = vld [vmem:[#allocation8 + $0x58] sm:$0xff]
    %v651 = vld [vmem:[#allocation8 + $0x60] sm:$0xff]
    %v652 = vld [vmem:[#allocation8 + $0x68] sm:$0xff]
    %v653 = vld [vmem:[#allocation8 + $0x70] sm:$0xff]
    %v654 = vld [vmem:[#allocation8 + $0x78] sm:$0xff]
    %v655 = vld [vmem:[#allocation8 + $0x80] sm:$0xff]
    %v656 = vld [vmem:[#allocation8 + $0x88] sm:$0xff]
    %v657 = vld [vmem:[#allocation8 + $0x90] sm:$0xff]
    %v658 = vld [vmem:[#allocation8 + $0x98] sm:$0xff]
    %v659 = vld [vmem:[#allocation8 + $0xa0] sm:$0xff]
    %v660 = vld [vmem:[#allocation8 + $0xa8] sm:$0xff]
    %v661 = vld [vmem:[#allocation8 + $0xb0] sm:$0xff]
    %v662 = vld [vmem:[#allocation8 + $0xb8] sm:$0xff]
    %v663 = vld [vmem:[#allocation8 + $0xc0] sm:$0xff]
    %v664 = vld [vmem:[#allocation8 + $0xc8] sm:$0xff]
    %v665 = vld [vmem:[#allocation8 + $0xd0] sm:$0xff]
    %v666 = vld [vmem:[#allocation8 + $0xd8] sm:$0xff]
    %v667 = vld [vmem:[#allocation8 + $0xe0] sm:$0xff]
    %v668 = vld [vmem:[#allocation8 + $0xe8] sm:$0xff]
    %v669 = vld [vmem:[#allocation8 + $0xf0] sm:$0xff]
    %v670 = vld [vmem:[#allocation8 + $0xf8] sm:$0xff]
    %v703 = vunpack.c.l.b16 %v639
    %v704 = vunpack.c.h.b16 %v639
    %v705 = vunpack.c.l.b16 %v640
    %v706 = vunpack.c.h.b16 %v640
    %v707 = vunpack.c.l.b16 %v641
    %v708 = vunpack.c.h.b16 %v641
    %v709 = vunpack.c.l.b16 %v642
    %v710 = vunpack.c.h.b16 %v642
    %v711 = vunpack.c.l.b16 %v643
    %v712 = vunpack.c.h.b16 %v643
    %v713 = vunpack.c.l.b16 %v644
    %v714 = vunpack.c.h.b16 %v644
    %v715 = vunpack.c.l.b16 %v645
    %v716 = vunpack.c.h.b16 %v645
    %v717 = vunpack.c.l.b16 %v646
    %v718 = vunpack.c.h.b16 %v646
    %v719 = vunpack.c.l.b16 %v647
    %v720 = vunpack.c.h.b16 %v647
    %v721 = vunpack.c.l.b16 %v648
    %v722 = vunpack.c.h.b16 %v648
    %v723 = vunpack.c.l.b16 %v649
    %v724 = vunpack.c.h.b16 %v649
    %v725 = vunpack.c.l.b16 %v650
    %v726 = vunpack.c.h.b16 %v650
    %v727 = vunpack.c.l.b16 %v651
    %v728 = vunpack.c.h.b16 %v651
    %v729 = vunpack.c.l.b16 %v652
    %v730 = vunpack.c.h.b16 %v652
    %v731 = vunpack.c.l.b16 %v653
    %v732 = vunpack.c.h.b16 %v653
    %v733 = vunpack.c.l.b16 %v654
    %v734 = vunpack.c.h.b16 %v654
    %v735 = vunpack.c.l.b16 %v655
    %v736 = vunpack.c.h.b16 %v655
    %v737 = vunpack.c.l.b16 %v656
    %v738 = vunpack.c.h.b16 %v656
    %v739 = vunpack.c.l.b16 %v657
    %v740 = vunpack.c.h.b16 %v657
    %v741 = vunpack.c.l.b16 %v658
    %v742 = vunpack.c.h.b16 %v658
    %v743 = vunpack.c.l.b16 %v659
    %v744 = vunpack.c.h.b16 %v659
    %v745 = vunpack.c.l.b16 %v660
    %v746 = vunpack.c.h.b16 %v660
    %v747 = vunpack.c.l.b16 %v661
    %v748 = vunpack.c.h.b16 %v661
    %v749 = vunpack.c.l.b16 %v662
    %v750 = vunpack.c.h.b16 %v662
    %v751 = vunpack.c.l.b16 %v663
    %v752 = vunpack.c.h.b16 %v663
    %v753 = vunpack.c.l.b16 %v664
    %v754 = vunpack.c.h.b16 %v664
    %v755 = vunpack.c.l.b16 %v665
    %v756 = vunpack.c.h.b16 %v665
    %v757 = vunpack.c.l.b16 %v666
    %v758 = vunpack.c.h.b16 %v666
    %v759 = vunpack.c.l.b16 %v667
    %v760 = vunpack.c.h.b16 %v667
    %v761 = vunpack.c.l.b16 %v668
    %v762 = vunpack.c.h.b16 %v668
    %v763 = vunpack.c.l.b16 %v669
    %v764 = vunpack.c.h.b16 %v669
    %v765 = vunpack.c.l.b16 %v670
    %v766 = vunpack.c.h.b16 %v670
    %v767 = vpack.c.b16 %v707, %v703
    %v768 = vpack.c.b16 %v708, %v704
    %v769 = vpack.c.b16 %v709, %v705
    %v770 = vpack.c.b16 %v710, %v706
    %v771 = vpack.c.b16 %v715, %v711
    %v772 = vpack.c.b16 %v716, %v712
    %v773 = vpack.c.b16 %v717, %v713
    %v774 = vpack.c.b16 %v718, %v714
    %v775 = vpack.c.b16 %v723, %v719
    %v776 = vpack.c.b16 %v724, %v720
    %v777 = vpack.c.b16 %v725, %v721
    %v778 = vpack.c.b16 %v726, %v722
    %v779 = vpack.c.b16 %v731, %v727
    %v780 = vpack.c.b16 %v732, %v728
    %v781 = vpack.c.b16 %v733, %v729
    %v782 = vpack.c.b16 %v734, %v730
    %v783 = vpack.c.b16 %v739, %v735
    %v784 = vpack.c.b16 %v740, %v736
    %v785 = vpack.c.b16 %v741, %v737
    %v786 = vpack.c.b16 %v742, %v738
    %v787 = vpack.c.b16 %v747, %v743
    %v788 = vpack.c.b16 %v748, %v744
    %v789 = vpack.c.b16 %v749, %v745
    %v790 = vpack.c.b16 %v750, %v746
    %v791 = vpack.c.b16 %v755, %v751
    %v792 = vpack.c.b16 %v756, %v752
    %v793 = vpack.c.b16 %v757, %v753
    %v794 = vpack.c.b16 %v758, %v754
    %v795 = vpack.c.b16 %v763, %v759
    %v796 = vpack.c.b16 %v764, %v760
    %v797 = vpack.c.b16 %v765, %v761
    %v798 = vpack.c.b16 %v766, %v762
    %831 = vmatprep.subr.bf16.mxu0 %v796
    %832 = vmatpush1.bf16.msra.mxu0 %v795
    %833 = vmatprep.subr.bf16.mxu0 %v792
    %834 = vmatpush1.bf16.msra.mxu0 %v791
    %835 = vmatprep.subr.bf16.mxu0 %v788
    %836 = vmatpush1.bf16.msra.mxu0 %v787
    %837 = vmatprep.subr.bf16.mxu0 %v784
    %838 = vmatpush1.bf16.msra.mxu0 %v783
    %839 = vmatprep.subr.bf16.mxu0 %v780
    %840 = vmatpush1.bf16.msra.mxu0 %v779
    %841 = vmatprep.subr.bf16.mxu0 %v776
    %842 = vmatpush1.bf16.msra.mxu0 %v775
    %843 = vmatprep.subr.bf16.mxu0 %v772
    %844 = vmatpush1.bf16.msra.mxu0 %v771
    %845 = vmatprep.subr.bf16.mxu0 %v768
    %846 = vmatpush1.bf16.msra.mxu0 %v767
    %847 = vmatprep.subr.bf16.mxu0 0
    %848 = vmatpush2.bf16.msra.mxu0 0
    %849 = vmatprep.subr.bf16.mxu0 0
    %850 = vmatpush2.bf16.msra.mxu0 0
    %851 = vmatprep.subr.bf16.mxu0 0
    %852 = vmatpush2.bf16.msra.mxu0 0
    %853 = vmatprep.subr.bf16.mxu0 0
    %854 = vmatpush2.bf16.msra.mxu0 0
    %855 = vmatprep.subr.bf16.mxu0 0
    %856 = vmatpush2.bf16.msra.mxu0 0
    %857 = vmatprep.subr.bf16.mxu0 0
    %858 = vmatpush2.bf16.msra.mxu0 0
    %859 = vmatprep.subr.bf16.mxu0 0
    %860 = vmatpush2.bf16.msra.mxu0 0
    %861 = vmatprep.subr.bf16.mxu0 0
    %862 = vmatpush2.bf16.msra.mxu0 0
    %863 = vmatprep.mubr.bf16.mxu0 0
    %864 = vmatmul.mubr.bf16.gmra.mxu0 0
    %v865 = vpop.f32.mrf.mxu0
    %v866 = vadd.f32 0.0, %v865
    %v867 = vpop.f32.mrf.mxu0
    %v868 = vadd.f32 0.0, %v867
    %v869 = vpop.f32.mrf.mxu0
    %v870 = vadd.f32 0.0, %v869
    %v871 = vpop.f32.mrf.mxu0
    %v872 = vadd.f32 0.0, %v871
    %873 = vdwg.mxu0
    %874 = vmatprep.subr.bf16.mxu0 %v798
    %875 = vmatpush1.bf16.msra.mxu0 %v797
    %876 = vmatprep.subr.bf16.mxu0 %v794
    %877 = vmatpush1.bf16.msra.mxu0 %v793
    %878 = vmatprep.subr.bf16.mxu0 %v790
    %879 = vmatpush1.bf16.msra.mxu0 %v789
    %880 = vmatprep.subr.bf16.mxu0 %v786
    %881 = vmatpush1.bf16.msra.mxu0 %v785
    %882 = vmatprep.subr.bf16.mxu0 %v782
    %883 = vmatpush1.bf16.msra.mxu0 %v781
    %884 = vmatprep.subr.bf16.mxu0 %v778
    %885 = vmatpush1.bf16.msra.mxu0 %v777
    %886 = vmatprep.subr.bf16.mxu0 %v774
    %887 = vmatpush1.bf16.msra.mxu0 %v773
    %888 = vmatprep.subr.bf16.mxu0 %v770
    %889 = vmatpush1.bf16.msra.mxu0 %v769
    %890 = vmatprep.subr.bf16.mxu0 0
    %891 = vmatpush2.bf16.msra.mxu0 0
    %892 = vmatprep.subr.bf16.mxu0 0
    %893 = vmatpush2.bf16.msra.mxu0 0
    %894 = vmatprep.subr.bf16.mxu0 0
    %895 = vmatpush2.bf16.msra.mxu0 0
    %896 = vmatprep.subr.bf16.mxu0 0
    %897 = vmatpush2.bf16.msra.mxu0 0
    %898 = vmatprep.subr.bf16.mxu0 0
    %899 = vmatpush2.bf16.msra.mxu0 0
    %900 = vmatprep.subr.bf16.mxu0 0
    %901 = vmatpush2.bf16.msra.mxu0 0
    %902 = vmatprep.subr.bf16.mxu0 0
    %903 = vmatpush2.bf16.msra.mxu0 0
    %904 = vmatprep.subr.bf16.mxu0 0
    %905 = vmatpush2.bf16.msra.mxu0 0
    %906 = vmatprep.mubr.bf16.mxu0 0
    %907 = vmatmul.mubr.bf16.gmra.mxu0 0
    %v908 = vpop.f32.mrf.mxu0
    %v909 = vadd.f32 0.0, %v908
    %v910 = vpop.f32.mrf.mxu0
    %v911 = vadd.f32 0.0, %v910
    %v912 = vpop.f32.mrf.mxu0
    %v913 = vadd.f32 0.0, %v912
    %v914 = vpop.f32.mrf.mxu0
    %v915 = vadd.f32 0.0, %v914
    %916 = vdwg.mxu0
    %v917 = vadd.f32 %v631, %v866
    %v918 = vadd.f32 %v632, %v868
    %v919 = vadd.f32 %v633, %v909
    %v920 = vadd.f32 %v634, %v911
    %v921 = vadd.f32 %v635, %v870
    %v922 = vadd.f32 %v636, %v872
    %v923 = vadd.f32 %v637, %v913
    %v924 = vadd.f32 %v638, %v915
    %v925 = vxor.u32 %v917, 2147483648
    %v926 = vxor.u32 %v921, 2147483648
    %v927 = vmul.f32 %v925, 1.442695
    %v928 = vpow.pop %v927
    %v929 = vmul.f32 %v926, 1.442695
    %v930 = vpow.pop %v929
    %v931 = vadd.f32 %v928, 1.0
    %v932 = vadd.f32 %v930, 1.0
    %v933 = vrcp.pop %v931
    %v934 = vmul.f32 1.0, %v933
    %v935 = vrcp.pop %v932
    %v936 = vmul.f32 1.0, %v935
    %v937 = vxor.u32 %v918, 2147483648
    %v938 = vxor.u32 %v922, 2147483648
    %v939 = vmul.f32 %v937, 1.442695
    %v940 = vpow.pop %v939
    %v941 = vmul.f32 %v938, 1.442695
    %v942 = vpow.pop %v941
    %v943 = vadd.f32 %v940, 1.0
    %v944 = vadd.f32 %v942, 1.0
    %v945 = vrcp.pop %v943
    %v946 = vmul.f32 1.0, %v945
    %v947 = vrcp.pop %v944
    %v948 = vmul.f32 1.0, %v947
    %v949 = vtanh.pop %v919
    %v950 = vtanh.pop %v923
    %v951 = vxor.u32 %v920, 2147483648
    %v952 = vxor.u32 %v924, 2147483648
    %v953 = vmul.f32 %v951, 1.442695
    %v954 = vpow.pop %v953
    %v955 = vmul.f32 %v952, 1.442695
    %v956 = vpow.pop %v955
    %v957 = vadd.f32 %v954, 1.0
    %v958 = vadd.f32 %v956, 1.0
    %v959 = vrcp.pop %v957
    %v960 = vmul.f32 1.0, %v959
    %v961 = vrcp.pop %v958
    %v962 = vmul.f32 1.0, %v961
    %v963 = vmul.f32 %v946, 0.0
    %v964 = vmul.f32 %v948, 0.0
    %v965 = vmul.f32 %v934, %v949
    %v966 = vmul.f32 %v936, %v950
    %v967 = vadd.f32 %v963, %v965
    %v968 = vadd.f32 %v964, %v966
    %v969 = vtanh.pop %v967
    %v970 = vtanh.pop %v968
    %v971 = vmul.f32 %v960, %v969
    %v972 = vmul.f32 %v962, %v970
    %s973 = scalar_lea.vmem [#allocation2], 64
    %v974 = vld [vmem:[%s973] sm:$0xff]
    %v975 = vld [vmem:[%s973 + $0x8] sm:$0xff]
    %v976 = vld [vmem:[%s973 + $0x10] sm:$0xff]
    %v977 = vld [vmem:[%s973 + $0x18] sm:$0xff]
    %v978 = vld [vmem:[%s973 + $0x20] sm:$0xff]
    %v979 = vld [vmem:[%s973 + $0x28] sm:$0xff]
    %v980 = vld [vmem:[%s973 + $0x30] sm:$0xff]
    %v981 = vld [vmem:[%s973 + $0x38] sm:$0xff]
    %v982 = vpack.c.bf16 %v972, %v971
    %983 = vmatprep.subr.bf16.mxu0 %v796
    %984 = vmatpush1.bf16.msra.mxu0 %v795
    %985 = vmatprep.subr.bf16.mxu0 %v792
    %986 = vmatpush1.bf16.msra.mxu0 %v791
    %987 = vmatprep.subr.bf16.mxu0 %v788
    %988 = vmatpush1.bf16.msra.mxu0 %v787
    %989 = vmatprep.subr.bf16.mxu0 %v784
    %990 = vmatpush1.bf16.msra.mxu0 %v783
    %991 = vmatprep.subr.bf16.mxu0 %v780
    %992 = vmatpush1.bf16.msra.mxu0 %v779
    %993 = vmatprep.subr.bf16.mxu0 %v776
    %994 = vmatpush1.bf16.msra.mxu0 %v775
    %995 = vmatprep.subr.bf16.mxu0 %v772
    %996 = vmatpush1.bf16.msra.mxu0 %v771
    %997 = vmatprep.subr.bf16.mxu0 %v768
    %998 = vmatpush1.bf16.msra.mxu0 %v767
    %999 = vmatprep.subr.bf16.mxu0 0
    %1000 = vmatpush2.bf16.msra.mxu0 0
    %1001 = vmatprep.subr.bf16.mxu0 0
    %1002 = vmatpush2.bf16.msra.mxu0 0
    %1003 = vmatprep.subr.bf16.mxu0 0
    %1004 = vmatpush2.bf16.msra.mxu0 0
    %1005 = vmatprep.subr.bf16.mxu0 0
    %1006 = vmatpush2.bf16.msra.mxu0 0
    %1007 = vmatprep.subr.bf16.mxu0 0
    %1008 = vmatpush2.bf16.msra.mxu0 0
    %1009 = vmatprep.subr.bf16.mxu0 0
    %1010 = vmatpush2.bf16.msra.mxu0 0
    %1011 = vmatprep.subr.bf16.mxu0 0
    %1012 = vmatpush2.bf16.msra.mxu0 0
    %1013 = vmatprep.subr.bf16.mxu0 0
    %1014 = vmatpush2.bf16.msra.mxu0 0
    %1015 = vmatprep.mubr.bf16.mxu0 0
    %1016 = vmatmul.mubr.bf16.gmra.mxu0 %v982
    %v1017 = vpop.f32.mrf.mxu0
    %v1018 = vadd.f32 0.0, %v1017
    %v1019 = vpop.f32.mrf.mxu0
    %v1020 = vadd.f32 0.0, %v1019
    %v1021 = vpop.f32.mrf.mxu0
    %v1022 = vadd.f32 0.0, %v1021
    %v1023 = vpop.f32.mrf.mxu0
    %v1024 = vadd.f32 0.0, %v1023
    %1025 = vdwg.mxu0
    %1026 = vmatprep.subr.bf16.mxu0 %v798
    %1027 = vmatpush1.bf16.msra.mxu0 %v797
    %1028 = vmatprep.subr.bf16.mxu0 %v794
    %1029 = vmatpush1.bf16.msra.mxu0 %v793
    %1030 = vmatprep.subr.bf16.mxu0 %v790
    %1031 = vmatpush1.bf16.msra.mxu0 %v789
    %1032 = vmatprep.subr.bf16.mxu0 %v786
    %1033 = vmatpush1.bf16.msra.mxu0 %v785
    %1034 = vmatprep.subr.bf16.mxu0 %v782
    %1035 = vmatpush1.bf16.msra.mxu0 %v781
    %1036 = vmatprep.subr.bf16.mxu0 %v778
    %1037 = vmatpush1.bf16.msra.mxu0 %v777
    %1038 = vmatprep.subr.bf16.mxu0 %v774
    %1039 = vmatpush1.bf16.msra.mxu0 %v773
    %1040 = vmatprep.subr.bf16.mxu0 %v770
    %1041 = vmatpush1.bf16.msra.mxu0 %v769
    %1042 = vmatprep.subr.bf16.mxu0 0
    %1043 = vmatpush2.bf16.msra.mxu0 0
    %1044 = vmatprep.subr.bf16.mxu0 0
    %1045 = vmatpush2.bf16.msra.mxu0 0
    %1046 = vmatprep.subr.bf16.mxu0 0
    %1047 = vmatpush2.bf16.msra.mxu0 0
    %1048 = vmatprep.subr.bf16.mxu0 0
    %1049 = vmatpush2.bf16.msra.mxu0 0
    %1050 = vmatprep.subr.bf16.mxu0 0
    %1051 = vmatpush2.bf16.msra.mxu0 0
    %1052 = vmatprep.subr.bf16.mxu0 0
    %1053 = vmatpush2.bf16.msra.mxu0 0
    %1054 = vmatprep.subr.bf16.mxu0 0
    %1055 = vmatpush2.bf16.msra.mxu0 0
    %1056 = vmatprep.subr.bf16.mxu0 0
    %1057 = vmatpush2.bf16.msra.mxu0 0
    %1058 = vmatprep.mubr.bf16.mxu0 0
    %1059 = vmatmul.mubr.bf16.gmra.mxu0 %v982
    %v1060 = vpop.f32.mrf.mxu0
    %v1061 = vadd.f32 0.0, %v1060
    %v1062 = vpop.f32.mrf.mxu0
    %v1063 = vadd.f32 0.0, %v1062
    %v1064 = vpop.f32.mrf.mxu0
    %v1065 = vadd.f32 0.0, %v1064
    %v1066 = vpop.f32.mrf.mxu0
    %v1067 = vadd.f32 0.0, %v1066
    %1068 = vdwg.mxu0
    %v1069 = vadd.f32 %v974, %v1018
    %v1070 = vadd.f32 %v975, %v1020
    %v1071 = vadd.f32 %v976, %v1061
    %v1072 = vadd.f32 %v977, %v1063
    %v1073 = vadd.f32 %v978, %v1022
    %v1074 = vadd.f32 %v979, %v1024
    %v1075 = vadd.f32 %v980, %v1065
    %v1076 = vadd.f32 %v981, %v1067
    %v1077 = vxor.u32 %v1069, 2147483648
    %v1078 = vxor.u32 %v1073, 2147483648
    %v1079 = vmul.f32 %v1077, 1.442695
    %v1080 = vpow.pop %v1079
    %v1081 = vmul.f32 %v1078, 1.442695
    %v1082 = vpow.pop %v1081
    %v1083 = vadd.f32 %v1080, 1.0
    %v1084 = vadd.f32 %v1082, 1.0
    %v1085 = vrcp.pop %v1083
    %v1086 = vmul.f32 1.0, %v1085
    %v1087 = vrcp.pop %v1084
    %v1088 = vmul.f32 1.0, %v1087
    %v1089 = vxor.u32 %v1070, 2147483648
    %v1090 = vxor.u32 %v1074, 2147483648
    %v1091 = vmul.f32 %v1089, 1.442695
    %v1092 = vpow.pop %v1091
    %v1093 = vmul.f32 %v1090, 1.442695
    %v1094 = vpow.pop %v1093
    %v1095 = vadd.f32 %v1092, 1.0
    %v1096 = vadd.f32 %v1094, 1.0
    %v1097 = vrcp.pop %v1095
    %v1098 = vmul.f32 1.0, %v1097
    %v1099 = vrcp.pop %v1096
    %v1100 = vmul.f32 1.0, %v1099
    %v1101 = vtanh.pop %v1071
    %v1102 = vtanh.pop %v1075
    %v1103 = vxor.u32 %v1072, 2147483648
    %v1104 = vxor.u32 %v1076, 2147483648
    %v1105 = vmul.f32 %v1103, 1.442695
    %v1106 = vpow.pop %v1105
    %v1107 = vmul.f32 %v1104, 1.442695
    %v1108 = vpow.pop %v1107
    %v1109 = vadd.f32 %v1106, 1.0
    %v1110 = vadd.f32 %v1108, 1.0
    %v1111 = vrcp.pop %v1109
    %v1112 = vmul.f32 1.0, %v1111
    %v1113 = vrcp.pop %v1110
    %v1114 = vmul.f32 1.0, %v1113
    %v1115 = vmul.f32 %v1098, %v967
    %v1116 = vmul.f32 %v1100, %v968
    %v1117 = vmul.f32 %v1086, %v1101
    %v1118 = vmul.f32 %v1088, %v1102
    %v1119 = vadd.f32 %v1115, %v1117
    %v1120 = vadd.f32 %v1116, %v1118
    %v1121 = vtanh.pop %v1119
    %v1122 = vtanh.pop %v1120
    %v1123 = vmul.f32 %v1112, %v1121
    %v1124 = vmul.f32 %v1114, %v1122
    %s1125 = scalar_lea.vmem [#allocation2], 128
    %v1126 = vld [vmem:[%s1125] sm:$0xff]
    %v1127 = vld [vmem:[%s1125 + $0x8] sm:$0xff]
    %v1128 = vld [vmem:[%s1125 + $0x10] sm:$0xff]
    %v1129 = vld [vmem:[%s1125 + $0x18] sm:$0xff]
    %v1130 = vld [vmem:[%s1125 + $0x20] sm:$0xff]
    %v1131 = vld [vmem:[%s1125 + $0x28] sm:$0xff]
    %v1132 = vld [vmem:[%s1125 + $0x30] sm:$0xff]
    %v1133 = vld [vmem:[%s1125 + $0x38] sm:$0xff]
    %v1134 = vpack.c.bf16 %v1124, %v1123
    %1135 = vmatprep.subr.bf16.mxu0 %v796
    %1136 = vmatpush1.bf16.msra.mxu0 %v795
    %1137 = vmatprep.subr.bf16.mxu0 %v792
    %1138 = vmatpush1.bf16.msra.mxu0 %v791
    %1139 = vmatprep.subr.bf16.mxu0 %v788
    %1140 = vmatpush1.bf16.msra.mxu0 %v787
    %1141 = vmatprep.subr.bf16.mxu0 %v784
    %1142 = vmatpush1.bf16.msra.mxu0 %v783
    %1143 = vmatprep.subr.bf16.mxu0 %v780
    %1144 = vmatpush1.bf16.msra.mxu0 %v779
    %1145 = vmatprep.subr.bf16.mxu0 %v776
    %1146 = vmatpush1.bf16.msra.mxu0 %v775
    %1147 = vmatprep.subr.bf16.mxu0 %v772
    %1148 = vmatpush1.bf16.msra.mxu0 %v771
    %1149 = vmatprep.subr.bf16.mxu0 %v768
    %1150 = vmatpush1.bf16.msra.mxu0 %v767
    %1151 = vmatprep.subr.bf16.mxu0 0
    %1152 = vmatpush2.bf16.msra.mxu0 0
    %1153 = vmatprep.subr.bf16.mxu0 0
    %1154 = vmatpush2.bf16.msra.mxu0 0
    %1155 = vmatprep.subr.bf16.mxu0 0
    %1156 = vmatpush2.bf16.msra.mxu0 0
    %1157 = vmatprep.subr.bf16.mxu0 0
    %1158 = vmatpush2.bf16.msra.mxu0 0
    %1159 = vmatprep.subr.bf16.mxu0 0
    %1160 = vmatpush2.bf16.msra.mxu0 0
    %1161 = vmatprep.subr.bf16.mxu0 0
    %1162 = vmatpush2.bf16.msra.mxu0 0
    %1163 = vmatprep.subr.bf16.mxu0 0
    %1164 = vmatpush2.bf16.msra.mxu0 0
    %1165 = vmatprep.subr.bf16.mxu0 0
    %1166 = vmatpush2.bf16.msra.mxu0 0
    %1167 = vmatprep.mubr.bf16.mxu0 0
    %1168 = vmatmul.mubr.bf16.gmra.mxu0 %v1134
    %v1169 = vpop.f32.mrf.mxu0
    %v1170 = vadd.f32 0.0, %v1169
    %v1171 = vpop.f32.mrf.mxu0
    %v1172 = vadd.f32 0.0, %v1171
    %v1173 = vpop.f32.mrf.mxu0
    %v1174 = vadd.f32 0.0, %v1173
    %v1175 = vpop.f32.mrf.mxu0
    %v1176 = vadd.f32 0.0, %v1175
    %1177 = vdwg.mxu0
    %1178 = vmatprep.subr.bf16.mxu0 %v798
    %1179 = vmatpush1.bf16.msra.mxu0 %v797
    %1180 = vmatprep.subr.bf16.mxu0 %v794
    %1181 = vmatpush1.bf16.msra.mxu0 %v793
    %1182 = vmatprep.subr.bf16.mxu0 %v790
    %1183 = vmatpush1.bf16.msra.mxu0 %v789
    %1184 = vmatprep.subr.bf16.mxu0 %v786
    %1185 = vmatpush1.bf16.msra.mxu0 %v785
    %1186 = vmatprep.subr.bf16.mxu0 %v782
    %1187 = vmatpush1.bf16.msra.mxu0 %v781
    %1188 = vmatprep.subr.bf16.mxu0 %v778
    %1189 = vmatpush1.bf16.msra.mxu0 %v777
    %1190 = vmatprep.subr.bf16.mxu0 %v774
    %1191 = vmatpush1.bf16.msra.mxu0 %v773
    %1192 = vmatprep.subr.bf16.mxu0 %v770
    %1193 = vmatpush1.bf16.msra.mxu0 %v769
    %1194 = vmatprep.subr.bf16.mxu0 0
    %1195 = vmatpush2.bf16.msra.mxu0 0
    %1196 = vmatprep.subr.bf16.mxu0 0
    %1197 = vmatpush2.bf16.msra.mxu0 0
    %1198 = vmatprep.subr.bf16.mxu0 0
    %1199 = vmatpush2.bf16.msra.mxu0 0
    %1200 = vmatprep.subr.bf16.mxu0 0
    %1201 = vmatpush2.bf16.msra.mxu0 0
    %1202 = vmatprep.subr.bf16.mxu0 0
    %1203 = vmatpush2.bf16.msra.mxu0 0
    %1204 = vmatprep.subr.bf16.mxu0 0
    %1205 = vmatpush2.bf16.msra.mxu0 0
    %1206 = vmatprep.subr.bf16.mxu0 0
    %1207 = vmatpush2.bf16.msra.mxu0 0
    %1208 = vmatprep.subr.bf16.mxu0 0
    %1209 = vmatpush2.bf16.msra.mxu0 0
    %1210 = vmatprep.mubr.bf16.mxu0 0
    %1211 = vmatmul.mubr.bf16.gmra.mxu0 %v1134
    %v1212 = vpop.f32.mrf.mxu0
    %v1213 = vadd.f32 0.0, %v1212
    %v1214 = vpop.f32.mrf.mxu0
    %v1215 = vadd.f32 0.0, %v1214
    %v1216 = vpop.f32.mrf.mxu0
    %v1217 = vadd.f32 0.0, %v1216
    %v1218 = vpop.f32.mrf.mxu0
    %v1219 = vadd.f32 0.0, %v1218
    %1220 = vdwg.mxu0
    %v1221 = vadd.f32 %v1126, %v1170
    %v1222 = vadd.f32 %v1127, %v1172
    %v1223 = vadd.f32 %v1128, %v1213
    %v1224 = vadd.f32 %v1129, %v1215
    %v1225 = vadd.f32 %v1130, %v1174
    %v1226 = vadd.f32 %v1131, %v1176
    %v1227 = vadd.f32 %v1132, %v1217
    %v1228 = vadd.f32 %v1133, %v1219
    %v1229 = vxor.u32 %v1221, 2147483648
    %v1230 = vxor.u32 %v1225, 2147483648
    %v1231 = vmul.f32 %v1229, 1.442695
    %v1232 = vpow.pop %v1231
    %v1233 = vmul.f32 %v1230, 1.442695
    %v1234 = vpow.pop %v1233
    %v1235 = vadd.f32 %v1232, 1.0
    %v1236 = vadd.f32 %v1234, 1.0
    %v1237 = vrcp.pop %v1235
    %v1238 = vmul.f32 1.0, %v1237
    %v1239 = vrcp.pop %v1236
    %v1240 = vmul.f32 1.0, %v1239
    %v1241 = vxor.u32 %v1222, 2147483648
    %v1242 = vxor.u32 %v1226, 2147483648
    %v1243 = vmul.f32 %v1241, 1.442695
    %v1244 = vpow.pop %v1243
    %v1245 = vmul.f32 %v1242, 1.442695
    %v1246 = vpow.pop %v1245
    %v1247 = vadd.f32 %v1244, 1.0
    %v1248 = vadd.f32 %v1246, 1.0
    %v1249 = vrcp.pop %v1247
    %v1250 = vmul.f32 1.0, %v1249
    %v1251 = vrcp.pop %v1248
    %v1252 = vmul.f32 1.0, %v1251
    %v1253 = vtanh.pop %v1223
    %v1254 = vtanh.pop %v1227
    %v1255 = vxor.u32 %v1224, 2147483648
    %v1256 = vxor.u32 %v1228, 2147483648
    %v1257 = vmul.f32 %v1255, 1.442695
    %v1258 = vpow.pop %v1257
    %v1259 = vmul.f32 %v1256, 1.442695
    %v1260 = vpow.pop %v1259
    %v1261 = vadd.f32 %v1258, 1.0
    %v1262 = vadd.f32 %v1260, 1.0
    %v1263 = vrcp.pop %v1261
    %v1264 = vmul.f32 1.0, %v1263
    %v1265 = vrcp.pop %v1262
    %v1266 = vmul.f32 1.0, %v1265
    %v1267 = vmul.f32 %v1250, %v1119
    %v1268 = vmul.f32 %v1252, %v1120
    %v1269 = vmul.f32 %v1238, %v1253
    %v1270 = vmul.f32 %v1240, %v1254
    %v1271 = vadd.f32 %v1267, %v1269
    %v1272 = vadd.f32 %v1268, %v1270
    %v1273 = vtanh.pop %v1271
    %v1274 = vtanh.pop %v1272
    %v1275 = vmul.f32 %v1264, %v1273
    %v1276 = vmul.f32 %v1266, %v1274
    %s1277 = scalar_lea.vmem [#allocation2], 192
    %v1278 = vld [vmem:[%s1277] sm:$0xff]
    %v1279 = vld [vmem:[%s1277 + $0x8] sm:$0xff]
    %v1280 = vld [vmem:[%s1277 + $0x10] sm:$0xff]
    %v1281 = vld [vmem:[%s1277 + $0x18] sm:$0xff]
    %v1282 = vld [vmem:[%s1277 + $0x20] sm:$0xff]
    %v1283 = vld [vmem:[%s1277 + $0x28] sm:$0xff]
    %v1284 = vld [vmem:[%s1277 + $0x30] sm:$0xff]
    %v1285 = vld [vmem:[%s1277 + $0x38] sm:$0xff]
    %v1286 = vpack.c.bf16 %v1276, %v1275
    %1287 = vmatprep.subr.bf16.mxu0 %v796
    %1288 = vmatpush1.bf16.msra.mxu0 %v795
    %1289 = vmatprep.subr.bf16.mxu0 %v792
    %1290 = vmatpush1.bf16.msra.mxu0 %v791
    %1291 = vmatprep.subr.bf16.mxu0 %v788
    %1292 = vmatpush1.bf16.msra.mxu0 %v787
    %1293 = vmatprep.subr.bf16.mxu0 %v784
    %1294 = vmatpush1.bf16.msra.mxu0 %v783
    %1295 = vmatprep.subr.bf16.mxu0 %v780
    %1296 = vmatpush1.bf16.msra.mxu0 %v779
    %1297 = vmatprep.subr.bf16.mxu0 %v776
    %1298 = vmatpush1.bf16.msra.mxu0 %v775
    %1299 = vmatprep.subr.bf16.mxu0 %v772
    %1300 = vmatpush1.bf16.msra.mxu0 %v771
    %1301 = vmatprep.subr.bf16.mxu0 %v768
    %1302 = vmatpush1.bf16.msra.mxu0 %v767
    %1303 = vmatprep.subr.bf16.mxu0 0
    %1304 = vmatpush2.bf16.msra.mxu0 0
    %1305 = vmatprep.subr.bf16.mxu0 0
    %1306 = vmatpush2.bf16.msra.mxu0 0
    %1307 = vmatprep.subr.bf16.mxu0 0
    %1308 = vmatpush2.bf16.msra.mxu0 0
    %1309 = vmatprep.subr.bf16.mxu0 0
    %1310 = vmatpush2.bf16.msra.mxu0 0
    %1311 = vmatprep.subr.bf16.mxu0 0
    %1312 = vmatpush2.bf16.msra.mxu0 0
    %1313 = vmatprep.subr.bf16.mxu0 0
    %1314 = vmatpush2.bf16.msra.mxu0 0
    %1315 = vmatprep.subr.bf16.mxu0 0
    %1316 = vmatpush2.bf16.msra.mxu0 0
    %1317 = vmatprep.subr.bf16.mxu0 0
    %1318 = vmatpush2.bf16.msra.mxu0 0
    %1319 = vmatprep.mubr.bf16.mxu0 0
    %1320 = vmatmul.mubr.bf16.gmra.mxu0 %v1286
    %v1321 = vpop.f32.mrf.mxu0
    %v1322 = vadd.f32 0.0, %v1321
    %v1323 = vpop.f32.mrf.mxu0
    %v1324 = vadd.f32 0.0, %v1323
    %v1325 = vpop.f32.mrf.mxu0
    %v1326 = vadd.f32 0.0, %v1325
    %v1327 = vpop.f32.mrf.mxu0
    %v1328 = vadd.f32 0.0, %v1327
    %1329 = vdwg.mxu0
    %1330 = vmatprep.subr.bf16.mxu0 %v798
    %1331 = vmatpush1.bf16.msra.mxu0 %v797
    %1332 = vmatprep.subr.bf16.mxu0 %v794
    %1333 = vmatpush1.bf16.msra.mxu0 %v793
    %1334 = vmatprep.subr.bf16.mxu0 %v790
    %1335 = vmatpush1.bf16.msra.mxu0 %v789
    %1336 = vmatprep.subr.bf16.mxu0 %v786
    %1337 = vmatpush1.bf16.msra.mxu0 %v785
    %1338 = vmatprep.subr.bf16.mxu0 %v782
    %1339 = vmatpush1.bf16.msra.mxu0 %v781
    %1340 = vmatprep.subr.bf16.mxu0 %v778
    %1341 = vmatpush1.bf16.msra.mxu0 %v777
    %1342 = vmatprep.subr.bf16.mxu0 %v774
    %1343 = vmatpush1.bf16.msra.mxu0 %v773
    %1344 = vmatprep.subr.bf16.mxu0 %v770
    %1345 = vmatpush1.bf16.msra.mxu0 %v769
    %1346 = vmatprep.subr.bf16.mxu0 0
    %1347 = vmatpush2.bf16.msra.mxu0 0
    %1348 = vmatprep.subr.bf16.mxu0 0
    %1349 = vmatpush2.bf16.msra.mxu0 0
    %1350 = vmatprep.subr.bf16.mxu0 0
    %1351 = vmatpush2.bf16.msra.mxu0 0
    %1352 = vmatprep.subr.bf16.mxu0 0
    %1353 = vmatpush2.bf16.msra.mxu0 0
    %1354 = vmatprep.subr.bf16.mxu0 0
    %1355 = vmatpush2.bf16.msra.mxu0 0
    %1356 = vmatprep.subr.bf16.mxu0 0
    %1357 = vmatpush2.bf16.msra.mxu0 0
    %1358 = vmatprep.subr.bf16.mxu0 0
    %1359 = vmatpush2.bf16.msra.mxu0 0
    %1360 = vmatprep.subr.bf16.mxu0 0
    %1361 = vmatpush2.bf16.msra.mxu0 0
    %1362 = vmatprep.mubr.bf16.mxu0 0
    %1363 = vmatmul.mubr.bf16.gmra.mxu0 %v1286
    %v1364 = vpop.f32.mrf.mxu0
    %v1365 = vadd.f32 0.0, %v1364
    %v1366 = vpop.f32.mrf.mxu0
    %v1367 = vadd.f32 0.0, %v1366
    %v1368 = vpop.f32.mrf.mxu0
    %v1369 = vadd.f32 0.0, %v1368
    %v1370 = vpop.f32.mrf.mxu0
    %v1371 = vadd.f32 0.0, %v1370
    %1372 = vdwg.mxu0
    %v1373 = vadd.f32 %v1278, %v1322
    %v1374 = vadd.f32 %v1279, %v1324
    %v1375 = vadd.f32 %v1280, %v1365
    %v1376 = vadd.f32 %v1281, %v1367
    %v1377 = vadd.f32 %v1282, %v1326
    %v1378 = vadd.f32 %v1283, %v1328
    %v1379 = vadd.f32 %v1284, %v1369
    %v1380 = vadd.f32 %v1285, %v1371
    %v1381 = vxor.u32 %v1373, 2147483648
    %v1382 = vxor.u32 %v1377, 2147483648
    %v1383 = vmul.f32 %v1381, 1.442695
    %v1384 = vpow.pop %v1383
    %v1385 = vmul.f32 %v1382, 1.442695
    %v1386 = vpow.pop %v1385
    %v1387 = vadd.f32 %v1384, 1.0
    %v1388 = vadd.f32 %v1386, 1.0
    %v1389 = vrcp.pop %v1387
    %v1390 = vmul.f32 1.0, %v1389
    %v1391 = vrcp.pop %v1388
    %v1392 = vmul.f32 1.0, %v1391
    %v1393 = vxor.u32 %v1374, 2147483648
    %v1394 = vxor.u32 %v1378, 2147483648
    %v1395 = vmul.f32 %v1393, 1.442695
    %v1396 = vpow.pop %v1395
    %v1397 = vmul.f32 %v1394, 1.442695
    %v1398 = vpow.pop %v1397
    %v1399 = vadd.f32 %v1396, 1.0
    %v1400 = vadd.f32 %v1398, 1.0
    %v1401 = vrcp.pop %v1399
    %v1402 = vmul.f32 1.0, %v1401
    %v1403 = vrcp.pop %v1400
    %v1404 = vmul.f32 1.0, %v1403
    %v1405 = vtanh.pop %v1375
    %v1406 = vtanh.pop %v1379
    %v1407 = vxor.u32 %v1376, 2147483648
    %v1408 = vxor.u32 %v1380, 2147483648
    %v1409 = vmul.f32 %v1407, 1.442695
    %v1410 = vpow.pop %v1409
    %v1411 = vmul.f32 %v1408, 1.442695
    %v1412 = vpow.pop %v1411
    %v1413 = vadd.f32 %v1410, 1.0
    %v1414 = vadd.f32 %v1412, 1.0
    %v1415 = vrcp.pop %v1413
    %v1416 = vmul.f32 1.0, %v1415
    %v1417 = vrcp.pop %v1414
    %v1418 = vmul.f32 1.0, %v1417
    %v1419 = vmul.f32 %v1402, %v1271
    %v1420 = vmul.f32 %v1404, %v1272
    %v1421 = vmul.f32 %v1390, %v1405
    %v1422 = vmul.f32 %v1392, %v1406
    %v1423 = vadd.f32 %v1419, %v1421
    %v1424 = vadd.f32 %v1420, %v1422
    %v1425 = vtanh.pop %v1423
    %v1426 = vtanh.pop %v1424
    %v1427 = vmul.f32 %v1416, %v1425
    %v1428 = vmul.f32 %v1418, %v1426
    %s1429 = scalar_lea.vmem [#allocation2], 256
    %v1430 = vld [vmem:[%s1429] sm:$0xff]
    %v1431 = vld [vmem:[%s1429 + $0x8] sm:$0xff]
    %v1432 = vld [vmem:[%s1429 + $0x10] sm:$0xff]
    %v1433 = vld [vmem:[%s1429 + $0x18] sm:$0xff]
    %v1434 = vld [vmem:[%s1429 + $0x20] sm:$0xff]
    %v1435 = vld [vmem:[%s1429 + $0x28] sm:$0xff]
    %v1436 = vld [vmem:[%s1429 + $0x30] sm:$0xff]
    %v1437 = vld [vmem:[%s1429 + $0x38] sm:$0xff]
    %v1438 = vpack.c.bf16 %v1428, %v1427
    %1439 = vmatprep.subr.bf16.mxu0 %v796
    %1440 = vmatpush1.bf16.msra.mxu0 %v795
    %1441 = vmatprep.subr.bf16.mxu0 %v792
    %1442 = vmatpush1.bf16.msra.mxu0 %v791
    %1443 = vmatprep.subr.bf16.mxu0 %v788
    %1444 = vmatpush1.bf16.msra.mxu0 %v787
    %1445 = vmatprep.subr.bf16.mxu0 %v784
    %1446 = vmatpush1.bf16.msra.mxu0 %v783
    %1447 = vmatprep.subr.bf16.mxu0 %v780
    %1448 = vmatpush1.bf16.msra.mxu0 %v779
    %1449 = vmatprep.subr.bf16.mxu0 %v776
    %1450 = vmatpush1.bf16.msra.mxu0 %v775
    %1451 = vmatprep.subr.bf16.mxu0 %v772
    %1452 = vmatpush1.bf16.msra.mxu0 %v771
    %1453 = vmatprep.subr.bf16.mxu0 %v768
    %1454 = vmatpush1.bf16.msra.mxu0 %v767
    %1455 = vmatprep.subr.bf16.mxu0 0
    %1456 = vmatpush2.bf16.msra.mxu0 0
    %1457 = vmatprep.subr.bf16.mxu0 0
    %1458 = vmatpush2.bf16.msra.mxu0 0
    %1459 = vmatprep.subr.bf16.mxu0 0
    %1460 = vmatpush2.bf16.msra.mxu0 0
    %1461 = vmatprep.subr.bf16.mxu0 0
    %1462 = vmatpush2.bf16.msra.mxu0 0
    %1463 = vmatprep.subr.bf16.mxu0 0
    %1464 = vmatpush2.bf16.msra.mxu0 0
    %1465 = vmatprep.subr.bf16.mxu0 0
    %1466 = vmatpush2.bf16.msra.mxu0 0
    %1467 = vmatprep.subr.bf16.mxu0 0
    %1468 = vmatpush2.bf16.msra.mxu0 0
    %1469 = vmatprep.subr.bf16.mxu0 0
    %1470 = vmatpush2.bf16.msra.mxu0 0
    %1471 = vmatprep.mubr.bf16.mxu0 0
    %1472 = vmatmul.mubr.bf16.gmra.mxu0 %v1438
    %v1473 = vpop.f32.mrf.mxu0
    %v1474 = vadd.f32 0.0, %v1473
    %v1475 = vpop.f32.mrf.mxu0
    %v1476 = vadd.f32 0.0, %v1475
    %v1477 = vpop.f32.mrf.mxu0
    %v1478 = vadd.f32 0.0, %v1477
    %v1479 = vpop.f32.mrf.mxu0
    %v1480 = vadd.f32 0.0, %v1479
    %1481 = vdwg.mxu0
    %1482 = vmatprep.subr.bf16.mxu0 %v798
    %1483 = vmatpush1.bf16.msra.mxu0 %v797
    %1484 = vmatprep.subr.bf16.mxu0 %v794
    %1485 = vmatpush1.bf16.msra.mxu0 %v793
    %1486 = vmatprep.subr.bf16.mxu0 %v790
    %1487 = vmatpush1.bf16.msra.mxu0 %v789
    %1488 = vmatprep.subr.bf16.mxu0 %v786
    %1489 = vmatpush1.bf16.msra.mxu0 %v785
    %1490 = vmatprep.subr.bf16.mxu0 %v782
    %1491 = vmatpush1.bf16.msra.mxu0 %v781
    %1492 = vmatprep.subr.bf16.mxu0 %v778
    %1493 = vmatpush1.bf16.msra.mxu0 %v777
    %1494 = vmatprep.subr.bf16.mxu0 %v774
    %1495 = vmatpush1.bf16.msra.mxu0 %v773
    %1496 = vmatprep.subr.bf16.mxu0 %v770
    %1497 = vmatpush1.bf16.msra.mxu0 %v769
    %1498 = vmatprep.subr.bf16.mxu0 0
    %1499 = vmatpush2.bf16.msra.mxu0 0
    %1500 = vmatprep.subr.bf16.mxu0 0
    %1501 = vmatpush2.bf16.msra.mxu0 0
    %1502 = vmatprep.subr.bf16.mxu0 0
    %1503 = vmatpush2.bf16.msra.mxu0 0
    %1504 = vmatprep.subr.bf16.mxu0 0
    %1505 = vmatpush2.bf16.msra.mxu0 0
    %1506 = vmatprep.subr.bf16.mxu0 0
    %1507 = vmatpush2.bf16.msra.mxu0 0
    %1508 = vmatprep.subr.bf16.mxu0 0
    %1509 = vmatpush2.bf16.msra.mxu0 0
    %1510 = vmatprep.subr.bf16.mxu0 0
    %1511 = vmatpush2.bf16.msra.mxu0 0
    %1512 = vmatprep.subr.bf16.mxu0 0
    %1513 = vmatpush2.bf16.msra.mxu0 0
    %1514 = vmatprep.mubr.bf16.mxu0 0
    %1515 = vmatmul.mubr.bf16.gmra.mxu0 %v1438
    %v1516 = vpop.f32.mrf.mxu0
    %v1517 = vadd.f32 0.0, %v1516
    %v1518 = vpop.f32.mrf.mxu0
    %v1519 = vadd.f32 0.0, %v1518
    %v1520 = vpop.f32.mrf.mxu0
    %v1521 = vadd.f32 0.0, %v1520
    %v1522 = vpop.f32.mrf.mxu0
    %v1523 = vadd.f32 0.0, %v1522
    %1524 = vdwg.mxu0
    %v1525 = vadd.f32 %v1430, %v1474
    %v1526 = vadd.f32 %v1431, %v1476
    %v1527 = vadd.f32 %v1432, %v1517
    %v1528 = vadd.f32 %v1433, %v1519
    %v1529 = vadd.f32 %v1434, %v1478
    %v1530 = vadd.f32 %v1435, %v1480
    %v1531 = vadd.f32 %v1436, %v1521
    %v1532 = vadd.f32 %v1437, %v1523
    %v1533 = vxor.u32 %v1525, 2147483648
    %v1534 = vxor.u32 %v1529, 2147483648
    %v1535 = vmul.f32 %v1533, 1.442695
    %v1536 = vpow.pop %v1535
    %v1537 = vmul.f32 %v1534, 1.442695
    %v1538 = vpow.pop %v1537
    %v1539 = vadd.f32 %v1536, 1.0
    %v1540 = vadd.f32 %v1538, 1.0
    %v1541 = vrcp.pop %v1539
    %v1542 = vmul.f32 1.0, %v1541
    %v1543 = vrcp.pop %v1540
    %v1544 = vmul.f32 1.0, %v1543
    %v1545 = vxor.u32 %v1526, 2147483648
    %v1546 = vxor.u32 %v1530, 2147483648
    %v1547 = vmul.f32 %v1545, 1.442695
    %v1548 = vpow.pop %v1547
    %v1549 = vmul.f32 %v1546, 1.442695
    %v1550 = vpow.pop %v1549
    %v1551 = vadd.f32 %v1548, 1.0
    %v1552 = vadd.f32 %v1550, 1.0
    %v1553 = vrcp.pop %v1551
    %v1554 = vmul.f32 1.0, %v1553
    %v1555 = vrcp.pop %v1552
    %v1556 = vmul.f32 1.0, %v1555
    %v1557 = vtanh.pop %v1527
    %v1558 = vtanh.pop %v1531
    %v1559 = vxor.u32 %v1528, 2147483648
    %v1560 = vxor.u32 %v1532, 2147483648
    %v1561 = vmul.f32 %v1559, 1.442695
    %v1562 = vpow.pop %v1561
    %v1563 = vmul.f32 %v1560, 1.442695
    %v1564 = vpow.pop %v1563
    %v1565 = vadd.f32 %v1562, 1.0
    %v1566 = vadd.f32 %v1564, 1.0
    %v1567 = vrcp.pop %v1565
    %v1568 = vmul.f32 1.0, %v1567
    %v1569 = vrcp.pop %v1566
    %v1570 = vmul.f32 1.0, %v1569
    %v1571 = vmul.f32 %v1554, %v1423
    %v1572 = vmul.f32 %v1556, %v1424
    %v1573 = vmul.f32 %v1542, %v1557
    %v1574 = vmul.f32 %v1544, %v1558
    %v1575 = vadd.f32 %v1571, %v1573
    %v1576 = vadd.f32 %v1572, %v1574
    %v1577 = vtanh.pop %v1575
    %v1578 = vtanh.pop %v1576
    %v1579 = vmul.f32 %v1568, %v1577
    %v1580 = vmul.f32 %v1570, %v1578
    %s1581 = scalar_lea.vmem [#allocation2], 320
    %v1582 = vld [vmem:[%s1581] sm:$0xff]
    %v1583 = vld [vmem:[%s1581 + $0x8] sm:$0xff]
    %v1584 = vld [vmem:[%s1581 + $0x10] sm:$0xff]
    %v1585 = vld [vmem:[%s1581 + $0x18] sm:$0xff]
    %v1586 = vld [vmem:[%s1581 + $0x20] sm:$0xff]
    %v1587 = vld [vmem:[%s1581 + $0x28] sm:$0xff]
    %v1588 = vld [vmem:[%s1581 + $0x30] sm:$0xff]
    %v1589 = vld [vmem:[%s1581 + $0x38] sm:$0xff]
    %v1590 = vpack.c.bf16 %v1580, %v1579
    %1591 = vmatprep.subr.bf16.mxu0 %v796
    %1592 = vmatpush1.bf16.msra.mxu0 %v795
    %1593 = vmatprep.subr.bf16.mxu0 %v792
    %1594 = vmatpush1.bf16.msra.mxu0 %v791
    %1595 = vmatprep.subr.bf16.mxu0 %v788
    %1596 = vmatpush1.bf16.msra.mxu0 %v787
    %1597 = vmatprep.subr.bf16.mxu0 %v784
    %1598 = vmatpush1.bf16.msra.mxu0 %v783
    %1599 = vmatprep.subr.bf16.mxu0 %v780
    %1600 = vmatpush1.bf16.msra.mxu0 %v779
    %1601 = vmatprep.subr.bf16.mxu0 %v776
    %1602 = vmatpush1.bf16.msra.mxu0 %v775
    %1603 = vmatprep.subr.bf16.mxu0 %v772
    %1604 = vmatpush1.bf16.msra.mxu0 %v771
    %1605 = vmatprep.subr.bf16.mxu0 %v768
    %1606 = vmatpush1.bf16.msra.mxu0 %v767
    %1607 = vmatprep.subr.bf16.mxu0 0
    %1608 = vmatpush2.bf16.msra.mxu0 0
    %1609 = vmatprep.subr.bf16.mxu0 0
    %1610 = vmatpush2.bf16.msra.mxu0 0
    %1611 = vmatprep.subr.bf16.mxu0 0
    %1612 = vmatpush2.bf16.msra.mxu0 0
    %1613 = vmatprep.subr.bf16.mxu0 0
    %1614 = vmatpush2.bf16.msra.mxu0 0
    %1615 = vmatprep.subr.bf16.mxu0 0
    %1616 = vmatpush2.bf16.msra.mxu0 0
    %1617 = vmatprep.subr.bf16.mxu0 0
    %1618 = vmatpush2.bf16.msra.mxu0 0
    %1619 = vmatprep.subr.bf16.mxu0 0
    %1620 = vmatpush2.bf16.msra.mxu0 0
    %1621 = vmatprep.subr.bf16.mxu0 0
    %1622 = vmatpush2.bf16.msra.mxu0 0
    %1623 = vmatprep.mubr.bf16.mxu0 0
    %1624 = vmatmul.mubr.bf16.gmra.mxu0 %v1590
    %v1625 = vpop.f32.mrf.mxu0
    %v1626 = vadd.f32 0.0, %v1625
    %v1627 = vpop.f32.mrf.mxu0
    %v1628 = vadd.f32 0.0, %v1627
    %v1629 = vpop.f32.mrf.mxu0
    %v1630 = vadd.f32 0.0, %v1629
    %v1631 = vpop.f32.mrf.mxu0
    %v1632 = vadd.f32 0.0, %v1631
    %1633 = vdwg.mxu0
    %1634 = vmatprep.subr.bf16.mxu0 %v798
    %1635 = vmatpush1.bf16.msra.mxu0 %v797
    %1636 = vmatprep.subr.bf16.mxu0 %v794
    %1637 = vmatpush1.bf16.msra.mxu0 %v793
    %1638 = vmatprep.subr.bf16.mxu0 %v790
    %1639 = vmatpush1.bf16.msra.mxu0 %v789
    %1640 = vmatprep.subr.bf16.mxu0 %v786
    %1641 = vmatpush1.bf16.msra.mxu0 %v785
    %1642 = vmatprep.subr.bf16.mxu0 %v782
    %1643 = vmatpush1.bf16.msra.mxu0 %v781
    %1644 = vmatprep.subr.bf16.mxu0 %v778
    %1645 = vmatpush1.bf16.msra.mxu0 %v777
    %1646 = vmatprep.subr.bf16.mxu0 %v774
    %1647 = vmatpush1.bf16.msra.mxu0 %v773
    %1648 = vmatprep.subr.bf16.mxu0 %v770
    %1649 = vmatpush1.bf16.msra.mxu0 %v769
    %1650 = vmatprep.subr.bf16.mxu0 0
    %1651 = vmatpush2.bf16.msra.mxu0 0
    %1652 = vmatprep.subr.bf16.mxu0 0
    %1653 = vmatpush2.bf16.msra.mxu0 0
    %1654 = vmatprep.subr.bf16.mxu0 0
    %1655 = vmatpush2.bf16.msra.mxu0 0
    %1656 = vmatprep.subr.bf16.mxu0 0
    %1657 = vmatpush2.bf16.msra.mxu0 0
    %1658 = vmatprep.subr.bf16.mxu0 0
    %1659 = vmatpush2.bf16.msra.mxu0 0
    %1660 = vmatprep.subr.bf16.mxu0 0
    %1661 = vmatpush2.bf16.msra.mxu0 0
    %1662 = vmatprep.subr.bf16.mxu0 0
    %1663 = vmatpush2.bf16.msra.mxu0 0
    %1664 = vmatprep.subr.bf16.mxu0 0
    %1665 = vmatpush2.bf16.msra.mxu0 0
    %1666 = vmatprep.mubr.bf16.mxu0 0
    %1667 = vmatmul.mubr.bf16.gmra.mxu0 %v1590
    %v1668 = vpop.f32.mrf.mxu0
    %v1669 = vadd.f32 0.0, %v1668
    %v1670 = vpop.f32.mrf.mxu0
    %v1671 = vadd.f32 0.0, %v1670
    %v1672 = vpop.f32.mrf.mxu0
    %v1673 = vadd.f32 0.0, %v1672
    %v1674 = vpop.f32.mrf.mxu0
    %v1675 = vadd.f32 0.0, %v1674
    %1676 = vdwg.mxu0
    %v1677 = vadd.f32 %v1582, %v1626
    %v1678 = vadd.f32 %v1583, %v1628
    %v1679 = vadd.f32 %v1584, %v1669
    %v1680 = vadd.f32 %v1585, %v1671
    %v1681 = vadd.f32 %v1586, %v1630
    %v1682 = vadd.f32 %v1587, %v1632
    %v1683 = vadd.f32 %v1588, %v1673
    %v1684 = vadd.f32 %v1589, %v1675
    %v1685 = vxor.u32 %v1677, 2147483648
    %v1686 = vxor.u32 %v1681, 2147483648
    %v1687 = vmul.f32 %v1685, 1.442695
    %v1688 = vpow.pop %v1687
    %v1689 = vmul.f32 %v1686, 1.442695
    %v1690 = vpow.pop %v1689
    %v1691 = vadd.f32 %v1688, 1.0
    %v1692 = vadd.f32 %v1690, 1.0
    %v1693 = vrcp.pop %v1691
    %v1694 = vmul.f32 1.0, %v1693
    %v1695 = vrcp.pop %v1692
    %v1696 = vmul.f32 1.0, %v1695
    %v1697 = vxor.u32 %v1678, 2147483648
    %v1698 = vxor.u32 %v1682, 2147483648
    %v1699 = vmul.f32 %v1697, 1.442695
    %v1700 = vpow.pop %v1699
    %v1701 = vmul.f32 %v1698, 1.442695
    %v1702 = vpow.pop %v1701
    %v1703 = vadd.f32 %v1700, 1.0
    %v1704 = vadd.f32 %v1702, 1.0
    %v1705 = vrcp.pop %v1703
    %v1706 = vmul.f32 1.0, %v1705
    %v1707 = vrcp.pop %v1704
    %v1708 = vmul.f32 1.0, %v1707
    %v1709 = vtanh.pop %v1679
    %v1710 = vtanh.pop %v1683
    %v1711 = vxor.u32 %v1680, 2147483648
    %v1712 = vxor.u32 %v1684, 2147483648
    %v1713 = vmul.f32 %v1711, 1.442695
    %v1714 = vpow.pop %v1713
    %v1715 = vmul.f32 %v1712, 1.442695
    %v1716 = vpow.pop %v1715
    %v1717 = vadd.f32 %v1714, 1.0
    %v1718 = vadd.f32 %v1716, 1.0
    %v1719 = vrcp.pop %v1717
    %v1720 = vmul.f32 1.0, %v1719
    %v1721 = vrcp.pop %v1718
    %v1722 = vmul.f32 1.0, %v1721
    %v1723 = vmul.f32 %v1706, %v1575
    %v1724 = vmul.f32 %v1708, %v1576
    %v1725 = vmul.f32 %v1694, %v1709
    %v1726 = vmul.f32 %v1696, %v1710
    %v1727 = vadd.f32 %v1723, %v1725
    %v1728 = vadd.f32 %v1724, %v1726
    %v1729 = vtanh.pop %v1727
    %v1730 = vtanh.pop %v1728
    %v1731 = vmul.f32 %v1720, %v1729
    %v1732 = vmul.f32 %v1722, %v1730
    %s1733 = scalar_lea.vmem [#allocation2], 384
    %v1734 = vld [vmem:[%s1733] sm:$0xff]
    %v1735 = vld [vmem:[%s1733 + $0x8] sm:$0xff]
    %v1736 = vld [vmem:[%s1733 + $0x10] sm:$0xff]
    %v1737 = vld [vmem:[%s1733 + $0x18] sm:$0xff]
    %v1738 = vld [vmem:[%s1733 + $0x20] sm:$0xff]
    %v1739 = vld [vmem:[%s1733 + $0x28] sm:$0xff]
    %v1740 = vld [vmem:[%s1733 + $0x30] sm:$0xff]
    %v1741 = vld [vmem:[%s1733 + $0x38] sm:$0xff]
    %v1742 = vpack.c.bf16 %v1732, %v1731
    %1743 = vmatprep.subr.bf16.mxu0 %v796
    %1744 = vmatpush1.bf16.msra.mxu0 %v795
    %1745 = vmatprep.subr.bf16.mxu0 %v792
    %1746 = vmatpush1.bf16.msra.mxu0 %v791
    %1747 = vmatprep.subr.bf16.mxu0 %v788
    %1748 = vmatpush1.bf16.msra.mxu0 %v787
    %1749 = vmatprep.subr.bf16.mxu0 %v784
    %1750 = vmatpush1.bf16.msra.mxu0 %v783
    %1751 = vmatprep.subr.bf16.mxu0 %v780
    %1752 = vmatpush1.bf16.msra.mxu0 %v779
    %1753 = vmatprep.subr.bf16.mxu0 %v776
    %1754 = vmatpush1.bf16.msra.mxu0 %v775
    %1755 = vmatprep.subr.bf16.mxu0 %v772
    %1756 = vmatpush1.bf16.msra.mxu0 %v771
    %1757 = vmatprep.subr.bf16.mxu0 %v768
    %1758 = vmatpush1.bf16.msra.mxu0 %v767
    %1759 = vmatprep.subr.bf16.mxu0 0
    %1760 = vmatpush2.bf16.msra.mxu0 0
    %1761 = vmatprep.subr.bf16.mxu0 0
    %1762 = vmatpush2.bf16.msra.mxu0 0
    %1763 = vmatprep.subr.bf16.mxu0 0
    %1764 = vmatpush2.bf16.msra.mxu0 0
    %1765 = vmatprep.subr.bf16.mxu0 0
    %1766 = vmatpush2.bf16.msra.mxu0 0
    %1767 = vmatprep.subr.bf16.mxu0 0
    %1768 = vmatpush2.bf16.msra.mxu0 0
    %1769 = vmatprep.subr.bf16.mxu0 0
    %1770 = vmatpush2.bf16.msra.mxu0 0
    %1771 = vmatprep.subr.bf16.mxu0 0
    %1772 = vmatpush2.bf16.msra.mxu0 0
    %1773 = vmatprep.subr.bf16.mxu0 0
    %1774 = vmatpush2.bf16.msra.mxu0 0
    %1775 = vmatprep.mubr.bf16.mxu0 0
    %1776 = vmatmul.mubr.bf16.gmra.mxu0 %v1742
    %v1777 = vpop.f32.mrf.mxu0
    %v1778 = vadd.f32 0.0, %v1777
    %v1779 = vpop.f32.mrf.mxu0
    %v1780 = vadd.f32 0.0, %v1779
    %v1781 = vpop.f32.mrf.mxu0
    %v1782 = vadd.f32 0.0, %v1781
    %v1783 = vpop.f32.mrf.mxu0
    %v1784 = vadd.f32 0.0, %v1783
    %1785 = vdwg.mxu0
    %1786 = vmatprep.subr.bf16.mxu0 %v798
    %1787 = vmatpush1.bf16.msra.mxu0 %v797
    %1788 = vmatprep.subr.bf16.mxu0 %v794
    %1789 = vmatpush1.bf16.msra.mxu0 %v793
    %1790 = vmatprep.subr.bf16.mxu0 %v790
    %1791 = vmatpush1.bf16.msra.mxu0 %v789
    %1792 = vmatprep.subr.bf16.mxu0 %v786
    %1793 = vmatpush1.bf16.msra.mxu0 %v785
    %1794 = vmatprep.subr.bf16.mxu0 %v782
    %1795 = vmatpush1.bf16.msra.mxu0 %v781
    %1796 = vmatprep.subr.bf16.mxu0 %v778
    %1797 = vmatpush1.bf16.msra.mxu0 %v777
    %1798 = vmatprep.subr.bf16.mxu0 %v774
    %1799 = vmatpush1.bf16.msra.mxu0 %v773
    %1800 = vmatprep.subr.bf16.mxu0 %v770
    %1801 = vmatpush1.bf16.msra.mxu0 %v769
    %1802 = vmatprep.subr.bf16.mxu0 0
    %1803 = vmatpush2.bf16.msra.mxu0 0
    %1804 = vmatprep.subr.bf16.mxu0 0
    %1805 = vmatpush2.bf16.msra.mxu0 0
    %1806 = vmatprep.subr.bf16.mxu0 0
    %1807 = vmatpush2.bf16.msra.mxu0 0
    %1808 = vmatprep.subr.bf16.mxu0 0
    %1809 = vmatpush2.bf16.msra.mxu0 0
    %1810 = vmatprep.subr.bf16.mxu0 0
    %1811 = vmatpush2.bf16.msra.mxu0 0
    %1812 = vmatprep.subr.bf16.mxu0 0
    %1813 = vmatpush2.bf16.msra.mxu0 0
    %1814 = vmatprep.subr.bf16.mxu0 0
    %1815 = vmatpush2.bf16.msra.mxu0 0
    %1816 = vmatprep.subr.bf16.mxu0 0
    %1817 = vmatpush2.bf16.msra.mxu0 0
    %1818 = vmatprep.mubr.bf16.mxu0 0
    %1819 = vmatmul.mubr.bf16.gmra.mxu0 %v1742
    %v1820 = vpop.f32.mrf.mxu0
    %v1821 = vadd.f32 0.0, %v1820
    %v1822 = vpop.f32.mrf.mxu0
    %v1823 = vadd.f32 0.0, %v1822
    %v1824 = vpop.f32.mrf.mxu0
    %v1825 = vadd.f32 0.0, %v1824
    %v1826 = vpop.f32.mrf.mxu0
    %v1827 = vadd.f32 0.0, %v1826
    %1828 = vdwg.mxu0
    %v1829 = vadd.f32 %v1734, %v1778
    %v1830 = vadd.f32 %v1735, %v1780
    %v1831 = vadd.f32 %v1736, %v1821
    %v1832 = vadd.f32 %v1737, %v1823
    %v1833 = vadd.f32 %v1738, %v1782
    %v1834 = vadd.f32 %v1739, %v1784
    %v1835 = vadd.f32 %v1740, %v1825
    %v1836 = vadd.f32 %v1741, %v1827
    %v1837 = vxor.u32 %v1829, 2147483648
    %v1838 = vxor.u32 %v1833, 2147483648
    %v1839 = vmul.f32 %v1837, 1.442695
    %v1840 = vpow.pop %v1839
    %v1841 = vmul.f32 %v1838, 1.442695
    %v1842 = vpow.pop %v1841
    %v1843 = vadd.f32 %v1840, 1.0
    %v1844 = vadd.f32 %v1842, 1.0
    %v1845 = vrcp.pop %v1843
    %v1846 = vmul.f32 1.0, %v1845
    %v1847 = vrcp.pop %v1844
    %v1848 = vmul.f32 1.0, %v1847
    %v1849 = vxor.u32 %v1830, 2147483648
    %v1850 = vxor.u32 %v1834, 2147483648
    %v1851 = vmul.f32 %v1849, 1.442695
    %v1852 = vpow.pop %v1851
    %v1853 = vmul.f32 %v1850, 1.442695
    %v1854 = vpow.pop %v1853
    %v1855 = vadd.f32 %v1852, 1.0
    %v1856 = vadd.f32 %v1854, 1.0
    %v1857 = vrcp.pop %v1855
    %v1858 = vmul.f32 1.0, %v1857
    %v1859 = vrcp.pop %v1856
    %v1860 = vmul.f32 1.0, %v1859
    %v1861 = vtanh.pop %v1831
    %v1862 = vtanh.pop %v1835
    %v1863 = vxor.u32 %v1832, 2147483648
    %v1864 = vxor.u32 %v1836, 2147483648
    %v1865 = vmul.f32 %v1863, 1.442695
    %v1866 = vpow.pop %v1865
    %v1867 = vmul.f32 %v1864, 1.442695
    %v1868 = vpow.pop %v1867
    %v1869 = vadd.f32 %v1866, 1.0
    %v1870 = vadd.f32 %v1868, 1.0
    %v1871 = vrcp.pop %v1869
    %v1872 = vmul.f32 1.0, %v1871
    %v1873 = vrcp.pop %v1870
    %v1874 = vmul.f32 1.0, %v1873
    %v1875 = vmul.f32 %v1858, %v1727
    %v1876 = vmul.f32 %v1860, %v1728
    %v1877 = vmul.f32 %v1846, %v1861
    %v1878 = vmul.f32 %v1848, %v1862
    %v1879 = vadd.f32 %v1875, %v1877
    %v1880 = vadd.f32 %v1876, %v1878
    %v1881 = vtanh.pop %v1879
    %v1882 = vtanh.pop %v1880
    %v1883 = vmul.f32 %v1872, %v1881
    %v1884 = vmul.f32 %v1874, %v1882
    %s1885 = scalar_lea.vmem [#allocation2], 448
    %v1886 = vld [vmem:[%s1885] sm:$0xff]
    %v1887 = vld [vmem:[%s1885 + $0x8] sm:$0xff]
    %v1888 = vld [vmem:[%s1885 + $0x10] sm:$0xff]
    %v1889 = vld [vmem:[%s1885 + $0x18] sm:$0xff]
    %v1890 = vld [vmem:[%s1885 + $0x20] sm:$0xff]
    %v1891 = vld [vmem:[%s1885 + $0x28] sm:$0xff]
    %v1892 = vld [vmem:[%s1885 + $0x30] sm:$0xff]
    %v1893 = vld [vmem:[%s1885 + $0x38] sm:$0xff]
    %v1894 = vpack.c.bf16 %v1884, %v1883
    %1895 = vmatprep.subr.bf16.mxu0 %v796
    %1896 = vmatpush1.bf16.msra.mxu0 %v795
    %1897 = vmatprep.subr.bf16.mxu0 %v792
    %1898 = vmatpush1.bf16.msra.mxu0 %v791
    %1899 = vmatprep.subr.bf16.mxu0 %v788
    %1900 = vmatpush1.bf16.msra.mxu0 %v787
    %1901 = vmatprep.subr.bf16.mxu0 %v784
    %1902 = vmatpush1.bf16.msra.mxu0 %v783
    %1903 = vmatprep.subr.bf16.mxu0 %v780
    %1904 = vmatpush1.bf16.msra.mxu0 %v779
    %1905 = vmatprep.subr.bf16.mxu0 %v776
    %1906 = vmatpush1.bf16.msra.mxu0 %v775
    %1907 = vmatprep.subr.bf16.mxu0 %v772
    %1908 = vmatpush1.bf16.msra.mxu0 %v771
    %1909 = vmatprep.subr.bf16.mxu0 %v768
    %1910 = vmatpush1.bf16.msra.mxu0 %v767
    %1911 = vmatprep.subr.bf16.mxu0 0
    %1912 = vmatpush2.bf16.msra.mxu0 0
    %1913 = vmatprep.subr.bf16.mxu0 0
    %1914 = vmatpush2.bf16.msra.mxu0 0
    %1915 = vmatprep.subr.bf16.mxu0 0
    %1916 = vmatpush2.bf16.msra.mxu0 0
    %1917 = vmatprep.subr.bf16.mxu0 0
    %1918 = vmatpush2.bf16.msra.mxu0 0
    %1919 = vmatprep.subr.bf16.mxu0 0
    %1920 = vmatpush2.bf16.msra.mxu0 0
    %1921 = vmatprep.subr.bf16.mxu0 0
    %1922 = vmatpush2.bf16.msra.mxu0 0
    %1923 = vmatprep.subr.bf16.mxu0 0
    %1924 = vmatpush2.bf16.msra.mxu0 0
    %1925 = vmatprep.subr.bf16.mxu0 0
    %1926 = vmatpush2.bf16.msra.mxu0 0
    %1927 = vmatprep.mubr.bf16.mxu0 0
    %1928 = vmatmul.mubr.bf16.gmra.mxu0 %v1894
    %v1929 = vpop.f32.mrf.mxu0
    %v1930 = vadd.f32 0.0, %v1929
    %v1931 = vpop.f32.mrf.mxu0
    %v1932 = vadd.f32 0.0, %v1931
    %v1933 = vpop.f32.mrf.mxu0
    %v1934 = vadd.f32 0.0, %v1933
    %v1935 = vpop.f32.mrf.mxu0
    %v1936 = vadd.f32 0.0, %v1935
    %1937 = vdwg.mxu0
    %1938 = vmatprep.subr.bf16.mxu0 %v798
    %1939 = vmatpush1.bf16.msra.mxu0 %v797
    %1940 = vmatprep.subr.bf16.mxu0 %v794
    %1941 = vmatpush1.bf16.msra.mxu0 %v793
    %1942 = vmatprep.subr.bf16.mxu0 %v790
    %1943 = vmatpush1.bf16.msra.mxu0 %v789
    %1944 = vmatprep.subr.bf16.mxu0 %v786
    %1945 = vmatpush1.bf16.msra.mxu0 %v785
    %1946 = vmatprep.subr.bf16.mxu0 %v782
    %1947 = vmatpush1.bf16.msra.mxu0 %v781
    %1948 = vmatprep.subr.bf16.mxu0 %v778
    %1949 = vmatpush1.bf16.msra.mxu0 %v777
    %1950 = vmatprep.subr.bf16.mxu0 %v774
    %1951 = vmatpush1.bf16.msra.mxu0 %v773
    %1952 = vmatprep.subr.bf16.mxu0 %v770
    %1953 = vmatpush1.bf16.msra.mxu0 %v769
    %1954 = vmatprep.subr.bf16.mxu0 0
    %1955 = vmatpush2.bf16.msra.mxu0 0
    %1956 = vmatprep.subr.bf16.mxu0 0
    %1957 = vmatpush2.bf16.msra.mxu0 0
    %1958 = vmatprep.subr.bf16.mxu0 0
    %1959 = vmatpush2.bf16.msra.mxu0 0
    %1960 = vmatprep.subr.bf16.mxu0 0
    %1961 = vmatpush2.bf16.msra.mxu0 0
    %1962 = vmatprep.subr.bf16.mxu0 0
    %1963 = vmatpush2.bf16.msra.mxu0 0
    %1964 = vmatprep.subr.bf16.mxu0 0
    %1965 = vmatpush2.bf16.msra.mxu0 0
    %1966 = vmatprep.subr.bf16.mxu0 0
    %1967 = vmatpush2.bf16.msra.mxu0 0
    %1968 = vmatprep.subr.bf16.mxu0 0
    %1969 = vmatpush2.bf16.msra.mxu0 0
    %1970 = vmatprep.mubr.bf16.mxu0 0
    %1971 = vmatmul.mubr.bf16.gmra.mxu0 %v1894
    %v1972 = vpop.f32.mrf.mxu0
    %v1973 = vadd.f32 0.0, %v1972
    %v1974 = vpop.f32.mrf.mxu0
    %v1975 = vadd.f32 0.0, %v1974
    %v1976 = vpop.f32.mrf.mxu0
    %v1977 = vadd.f32 0.0, %v1976
    %v1978 = vpop.f32.mrf.mxu0
    %v1979 = vadd.f32 0.0, %v1978
    %1980 = vdwg.mxu0
    %v1981 = vadd.f32 %v1886, %v1930
    %v1982 = vadd.f32 %v1887, %v1932
    %v1983 = vadd.f32 %v1888, %v1973
    %v1984 = vadd.f32 %v1889, %v1975
    %v1985 = vadd.f32 %v1890, %v1934
    %v1986 = vadd.f32 %v1891, %v1936
    %v1987 = vadd.f32 %v1892, %v1977
    %v1988 = vadd.f32 %v1893, %v1979
    %v1989 = vxor.u32 %v1981, 2147483648
    %v1990 = vxor.u32 %v1985, 2147483648
    %v1991 = vmul.f32 %v1989, 1.442695
    %v1992 = vpow.pop %v1991
    %v1993 = vmul.f32 %v1990, 1.442695
    %v1994 = vpow.pop %v1993
    %v1995 = vadd.f32 %v1992, 1.0
    %v1996 = vadd.f32 %v1994, 1.0
    %v1997 = vrcp.pop %v1995
    %v1998 = vmul.f32 1.0, %v1997
    %v1999 = vrcp.pop %v1996
    %v2000 = vmul.f32 1.0, %v1999
    %v2001 = vxor.u32 %v1982, 2147483648
    %v2002 = vxor.u32 %v1986, 2147483648
    %v2003 = vmul.f32 %v2001, 1.442695
    %v2004 = vpow.pop %v2003
    %v2005 = vmul.f32 %v2002, 1.442695
    %v2006 = vpow.pop %v2005
    %v2007 = vadd.f32 %v2004, 1.0
    %v2008 = vadd.f32 %v2006, 1.0
    %v2009 = vrcp.pop %v2007
    %v2010 = vmul.f32 1.0, %v2009
    %v2011 = vrcp.pop %v2008
    %v2012 = vmul.f32 1.0, %v2011
    %v2013 = vtanh.pop %v1983
    %v2014 = vtanh.pop %v1987
    %v2015 = vxor.u32 %v1984, 2147483648
    %v2016 = vxor.u32 %v1988, 2147483648
    %v2017 = vmul.f32 %v2015, 1.442695
    %v2018 = vpow.pop %v2017
    %v2019 = vmul.f32 %v2016, 1.442695
    %v2020 = vpow.pop %v2019
    %v2021 = vadd.f32 %v2018, 1.0
    %v2022 = vadd.f32 %v2020, 1.0
    %v2023 = vrcp.pop %v2021
    %v2024 = vmul.f32 1.0, %v2023
    %v2025 = vrcp.pop %v2022
    %v2026 = vmul.f32 1.0, %v2025
    %v2027 = vmul.f32 %v2010, %v1879
    %v2028 = vmul.f32 %v2012, %v1880
    %v2029 = vmul.f32 %v1998, %v2013
    %v2030 = vmul.f32 %v2000, %v2014
    %v2031 = vadd.f32 %v2027, %v2029
    %v2032 = vadd.f32 %v2028, %v2030
    %v2033 = vtanh.pop %v2031
    %v2034 = vtanh.pop %v2032
    %v2035 = vmul.f32 %v2024, %v2033
    %v2036 = vmul.f32 %v2026, %v2034
    %2037 = vst [vmem:[#allocation9] sm:$0xff] %v2035
    %2038 = vst [vmem:[#allocation9 + $0x8] sm:$0xff] %v2036
    %2039 = vst [vmem:[#allocation10] sm:$0xff] %v2031
    %2040 = vst [vmem:[#allocation10 + $0x8] sm:$0xff] %v2032
    // Predicated region
    $region30: #{tpu_custom_call.1} parent=1 // pred_check
      _
    $region31: #{tpu_custom_call.1} parent=1 // pred_check_branch
      %2042 = sbr.rel (0) target = $region33
    $region32: #{tpu_custom_call.1} parent=1 // pred_region
      %s2044 = ssub.s32 256, 256
      %2045 = vsyncadd [#allocation5], %s2044
      %s2046 = sshll.u32 [#allocation9], 4
      %s2047 = int_to_ptr.vmem [resolvable:$true] %s2046
      %2052 = dma.vmem_to_hbm [thread:$0]  %s2047, 256, %s4, [#allocation5], 128, 128, 8
    $region33: #{tpu_custom_call.1} parent=1 // pred_fallthru
      _
    // Predicated region
    $region34: #{tpu_custom_call.1} parent=1 // pred_check
      _
    $region35: #{tpu_custom_call.1} parent=1 // pred_check_branch
      %2054 = sbr.rel (0) target = $region37
    $region36: #{tpu_custom_call.1} parent=1 // pred_region
      %s2056 = ssub.s32 256, 256
      %2057 = vsyncadd [#allocation11], %s2056
      %s2058 = sshll.u32 [#allocation10], 4
      %s2059 = int_to_ptr.vmem [resolvable:$true] %s2058
      %2064 = dma.vmem_to_hbm [thread:$0]  %s2059, 256, %s5, [#allocation11], 128, 128, 8
    $region37: #{tpu_custom_call.1} parent=1 // pred_fallthru
      _
    // Predicated region
    $region38: #{tpu_custom_call.1} parent=1 // pred_check
      _
    $region39: #{tpu_custom_call.1} parent=1 // pred_check_branch
      %2066 = sbr.rel (0) target = $region41
    $region40: #{tpu_custom_call.1} parent=1 // pred_region
      %2067 = dma.done [#allocation5], 256
    $region41: #{tpu_custom_call.1} parent=1 // pred_fallthru
      _
    // Predicated region
    $region42: #{tpu_custom_call.1} parent=1 // pred_check
      _
    $region43: #{tpu_custom_call.1} parent=1 // pred_check_branch
      %2069 = sbr.rel (0) target = $region45
    $region44: #{tpu_custom_call.1} parent=1 // pred_region
      %2070 = dma.done [#allocation11], 256
    $region45: #{tpu_custom_call.1} parent=1 // pred_fallthru
      _
    %2071 = vsyncpa [#allocation4], 1
    %2072 = vsyncpa [#allocation7], 1
    %2073 = vsyncpa [#allocation5], 1
    %2074 = vsyncpa [#allocation11], 1

</llo_original>
